<compile_context>
chip_gen: v7x
topology: tpu7x:2x2x1
jax: 0.10.0
libtpu: 0.0.40
codegen_flags: <defaults>
</compile_context>

<pallas_src>
import jax
import jax.numpy as jnp
from jax.experimental import pallas as pl
from jax.experimental.pallas import tpu as pltpu


# ----------------------------- helpers ---------------------------------------


def _round_up(x, m):
    return ((x + m - 1) // m) * m


def _gelu_tanh(x):
    # tanh-approx GELU ("gelu_new"); tanh runs on the (otherwise idle) EUP.
    c = 0.7978845608028654  # sqrt(2/pi)
    return 0.5 * x * (1.0 + jnp.tanh(c * (x + 0.044715 * x * x * x)))


def _layer_norm(x, gamma, beta, eps=1e-12):
    # Statistics and eps stay in f32 (BertLayerNorm semantics).
    mean = jnp.mean(x, axis=-1, keepdims=True)
    xc = x - mean
    var = jnp.mean(xc * xc, axis=-1, keepdims=True)
    inv = jax.lax.rsqrt(var + eps)
    return xc * inv * gamma + beta


def _choose_tm(N, tm):
    """Row tile: multiple of 8; >=2 grid steps when N allows (v7x has 2 TCs)."""
    tm = max(8, min(int(tm), _round_up(N, 8)))
    tm = _round_up(tm, 8)
    if N > 8 and pl.cdiv(N, tm) < 2:
        tm = _round_up(pl.cdiv(N, 2), 8)
    return tm


def _vmem_limit_bytes(tm, I, H, x_dtype, out_dtype, w_dtype):
    xb = jnp.dtype(x_dtype).itemsize
    ob = jnp.dtype(out_dtype).itemsize
    wb = jnp.dtype(w_dtype).itemsize
    est = (
        2 * tm * I * xb          # double-buffered input tiles
        + 2 * tm * H * ob        # double-buffered output tiles
        + (I * H + H * H) * wb   # resident (single-buffered) weights
        + 8 * H * 4              # packed bias/LN slab
        + 6 * tm * H * 4         # live f32 (tm, H) temporaries
        + tm * I * wb            # x cast to matmul dtype
    )
    try:
        # Generation-aware cap with headroom (v7x: 64 MiB physical per TC).
        cap = int(pltpu.get_tpu_info().vmem_capacity_bytes * 0.8)
    except Exception:
        cap = 100 * 2 ** 20  # conservative: assume >=128 MiB physical VMEM
    return int(min(cap, max(32 * 2 ** 20, int(est * 1.25))))


def _cost_estimate(N, I, H, x_dtype, out_dtype, w_dtype):
    xb = jnp.dtype(x_dtype).itemsize
    ob = jnp.dtype(out_dtype).itemsize
    wb = jnp.dtype(w_dtype).itemsize
    return pl.CostEstimate(
        flops=int(2 * N * (I * H + H * H) + 12 * N * H),
        transcendentals=int(2 * N * H + 2 * N),
        bytes_accessed=int(
            N * I * xb + N * H * ob + (I * H + H * H) * wb + 8 * H * 4
        ),
    )


# ----------------------------- kernel ---------------------------------------


def _mlp_ln_kernel(x_ref, w1_ref, w2_ref, p_ref, o_ref):
    # x_ref : (TM, I)  input token tile (bf16 or f32)
    # w1_ref: (I, H)   linear1 weight, pre-transposed (in x out), bf16
    # w2_ref: (H, H)   linear2 weight, pre-transposed, bf16
    # p_ref : (8, H)   f32 slab: rows = b1, g1, be1, b2, g2, be2, 0, 0
    # o_ref : (TM, H)  output tile
    mm_dtype = w1_ref.dtype
    p = p_ref[...]
    b1, g1, be1 = p[0:1, :], p[1:2, :], p[2:3, :]
    b2, g2, be2 = p[3:4, :], p[4:5, :], p[5:6, :]

    # Linear1 -> GELU -> LayerNorm1  (bf16 MXU operands, f32 accumulate/norm).
    h = jnp.dot(x_ref[...].astype(mm_dtype), w1_ref[...],
                preferred_element_type=jnp.float32)
    h = _gelu_tanh(h + b1)
    h = _layer_norm(h, g1, be1)

    # Linear2 -> GELU -> LayerNorm2.
    h = jnp.dot(h.astype(mm_dtype), w2_ref[...],
                preferred_element_type=jnp.float32)
    h = _gelu_tanh(h + b2)
    h = _layer_norm(h, g2, be2)

    o_ref[...] = h.astype(o_ref.dtype)


# ----------------------------- wrapper ---------------------------------------


def pack_params(raw, matmul_dtype=jnp.bfloat16):
    """One-time conversion to the kernel-ready layout (do NOT call per step).

    * w1 / w2 are stored persistently in `matmul_dtype` (bf16 halves HBM/VMEM
      bytes and is MXU-native) — avoids a per-call cast pass over HBM.
    * The six (1, H) bias / LayerNorm vectors are packed into one (8, H) f32
      slab -> a single DMA / buffer instead of six.
    """
    H = raw["w1"].shape[1]
    slab = jnp.zeros((8, H), jnp.float32)
    for r, name in enumerate(("b1", "g1", "be1", "b2", "g2", "be2")):
        slab = slab.at[r].set(raw[name].reshape(H).astype(jnp.float32))
    return {
        "w1": raw["w1"].astype(matmul_dtype),   # (I, H) = nn.Linear weight.T
        "w2": raw["w2"].astype(matmul_dtype),   # (H, H)
        "slab": slab,
    }


def _const_spec(shape, single_buffer):
    if single_buffer:
        # Grid-invariant operand: single resident buffer (no double-buffering).
        return pl.BlockSpec(shape, lambda i: (0, 0), pipeline_mode=pl.Buffered(1))
    return pl.BlockSpec(shape, lambda i: (0, 0))


def _build_mlp_call(N, I, H, tm, x_dtype, out_dtype, w_dtype, single_buffer):
    return pl.pallas_call(
        _mlp_ln_kernel,
        out_shape=jax.ShapeDtypeStruct((N, H), out_dtype),
        grid=(pl.cdiv(N, tm),),
        in_specs=[
            pl.BlockSpec((tm, I), lambda i: (i, 0)),     # x tile (ragged-edge OK)
            _const_spec((I, H), single_buffer),          # w1
            _const_spec((H, H), single_buffer),          # w2
            _const_spec((8, H), single_buffer),          # bias/LN slab
        ],
        out_specs=pl.BlockSpec((tm, H), lambda i: (i, 0)),
        compiler_params=pltpu.CompilerParams(
            dimension_semantics=("parallel",),
            vmem_limit_bytes=_vmem_limit_bytes(tm, I, H, x_dtype, out_dtype,
                                               w_dtype),
        ),
        cost_estimate=_cost_estimate(N, I, H, x_dtype, out_dtype, w_dtype),
    )


def mlp_with_layer_norm(hidden_states, packed_params, *, tm=512, out_dtype=None):
    """hidden_states: [B, S, input_size] -> [B, S, hidden_size].

    Pass bf16 hidden_states (and pack_params-produced weights) for the
    memory-bound fast path.  Output dtype defaults to the input dtype.
    """
    B, S, I = hidden_states.shape
    w1, w2, slab = packed_params["w1"], packed_params["w2"], packed_params["slab"]
    H = w1.shape[1]
    N = B * S
    out_dtype = hidden_states.dtype if out_dtype is None else out_dtype

    # Flatten only (free): no pad, no dtype cast -> no extra HBM pass.
    x2d = hidden_states.reshape(N, I)
    tm = _choose_tm(N, tm)

    try:
        call = _build_mlp_call(N, I, H, tm, x2d.dtype, out_dtype, w1.dtype,
                               single_buffer=True)
        out2d = call(x2d, w1, w2, slab)
    except Exception:
        # Fallback for jax versions that reject pl.Buffered(1) on a top-level
        # BlockSpec: plain (double-buffered) constant specs.
        call = _build_mlp_call(N, I, H, tm, x2d.dtype, out_dtype, w1.dtype,
                               single_buffer=False)
        out2d = call(x2d, w1, w2, slab)

    return out2d.reshape(B, S, H)


# ----------------------------- reference -------------------------------------


def _reference(hidden_states, raw_params, matmul_dtype=jnp.float32):
    x = hidden_states.astype(jnp.float32)

    def mm(a, w):
        return jnp.dot(a.astype(matmul_dtype), w.astype(matmul_dtype),
                       preferred_element_type=jnp.float32)

    h = mm(x, raw_params["w1"]) + raw_params["b1"]
    h = _gelu_tanh(h)
    h = _layer_norm(h, raw_params["g1"], raw_params["be1"])
    h = mm(h, raw_params["w2"]) + raw_params["b2"]
    h = _gelu_tanh(h)
    h = _layer_norm(h, raw_params["g2"], raw_params["be2"])
    return h


def _init_params(key, input_size, hidden_size):
    ks = jax.random.split(key, 4)
    s = 0.05
    I, H = input_size, hidden_size
    return {
        # nn.Linear weights are (out, in); stored pre-transposed as (in, out).
        "w1": jax.random.normal(ks[0], (I, H), jnp.float32) * s,
        "b1": jax.random.normal(ks[1], (1, H), jnp.float32) * s,
        "g1": jnp.ones((1, H), jnp.float32),
        "be1": jnp.zeros((1, H), jnp.float32),
        "w2": jax.random.normal(ks[2], (H, H), jnp.float32) * s,
        "b2": jax.random.normal(ks[3], (1, H), jnp.float32) * s,
        "g2": jnp.ones((1, H), jnp.float32),
        "be2": jnp.zeros((1, H), jnp.float32),
    }


# ----------------------------- main -------------------------------------------


if __name__ == "__main__":
    B, S, I, H = 2, 8, 256, 128

    key = jax.random.PRNGKey(0)
    k_x, k_p = jax.random.split(key)

    # bf16 activations over HBM (halves I/O bytes of a memory-bound kernel).
    hidden_states = jax.random.normal(k_x, (B, S, I), jnp.float32).astype(
        jnp.bfloat16)

    raw = _init_params(k_p, I, H)
    packed = pack_params(raw)   # one-time: bf16 weights + packed (8, H) slab

    out = mlp_with_layer_norm(hidden_states, packed)
    out = jax.block_until_ready(out)
    assert out.shape == (B, S, H), out.shape
    assert out.dtype == jnp.bfloat16, out.dtype
    out_f32 = out.astype(jnp.float32)

    # Precision-matched reference (same bf16 input / bf16 matmul operands,
    # f32 everywhere else): verifies the kernel math tightly.
    ref_bf16 = _reference(hidden_states, raw, matmul_dtype=jnp.bfloat16)
    assert jnp.allclose(out_f32, ref_bf16, atol=3e-2, rtol=3e-2), (
        float(jnp.max(jnp.abs(out_f32 - ref_bf16)))
    )

    # Full-f32 reference: relaxed tolerance accounts for bf16 weights /
    # activations / output rounding.
    ref_f32 = _reference(hidden_states, raw, matmul_dtype=jnp.float32)
    assert jnp.allclose(out_f32, ref_f32, atol=1.5e-1, rtol=1.5e-1), (
        float(jnp.max(jnp.abs(out_f32 - ref_f32)))
    )

    print("KERNEL_OK")
</pallas_src>

<mosaic_0001>
module attributes {stable_mosaic.version = 11 : i64} {
  func.func @_mlp_ln_kernel(%arg0: i32, %arg1: memref<8x256xbf16, #tpu.memory_space<vmem>>, %arg2: memref<256x128xbf16, #tpu.memory_space<vmem>>, %arg3: memref<128x128xbf16, #tpu.memory_space<vmem>>, %arg4: memref<8x128xf32, #tpu.memory_space<vmem>>, %arg5: memref<8x128xbf16, #tpu.memory_space<vmem>>) attributes {dimension_semantics = [#tpu.dimension_semantics<parallel>], iteration_bounds = array<i64: 2>, scalar_prefetch = 0 : i64, scratch_operands = 0 : i64, tpu.core_type = #tpu.core_type<tc>, window_params = [{transform_indices = @transform_0, window_bounds = array<i64: 8, 256>}, {pipeline_mode = #tpu.pipeline_mode<synchronous>, transform_indices = @transform_1, window_bounds = array<i64: 256, 128>}, {pipeline_mode = #tpu.pipeline_mode<synchronous>, transform_indices = @transform_2, window_bounds = array<i64: 128, 128>}, {pipeline_mode = #tpu.pipeline_mode<synchronous>, transform_indices = @transform_3, window_bounds = array<i64: 8, 128>}, {transform_indices = @transform_4, window_bounds = array<i64: 8, 128>}]} {
    %c0 = arith.constant 0 : index
    %c0_0 = arith.constant 0 : index
    %0 = vector.load %arg4[%c0, %c0_0] : memref<8x128xf32, #tpu.memory_space<vmem>>, vector<8x128xf32>
    %1 = vector.extract_strided_slice %0 {offsets = [0, 0], sizes = [1, 128], strides = [1, 1]} : vector<8x128xf32> to vector<1x128xf32>
    %2 = vector.extract_strided_slice %0 {offsets = [1, 0], sizes = [1, 128], strides = [1, 1]} : vector<8x128xf32> to vector<1x128xf32>
    %3 = vector.extract_strided_slice %0 {offsets = [2, 0], sizes = [1, 128], strides = [1, 1]} : vector<8x128xf32> to vector<1x128xf32>
    %4 = vector.extract_strided_slice %0 {offsets = [3, 0], sizes = [1, 128], strides = [1, 1]} : vector<8x128xf32> to vector<1x128xf32>
    %5 = vector.extract_strided_slice %0 {offsets = [4, 0], sizes = [1, 128], strides = [1, 1]} : vector<8x128xf32> to vector<1x128xf32>
    %6 = vector.extract_strided_slice %0 {offsets = [5, 0], sizes = [1, 128], strides = [1, 1]} : vector<8x128xf32> to vector<1x128xf32>
    %c0_1 = arith.constant 0 : index
    %c0_2 = arith.constant 0 : index
    %7 = vector.load %arg1[%c0_1, %c0_2] : memref<8x256xbf16, #tpu.memory_space<vmem>>, vector<8x256xbf16>
    %c0_3 = arith.constant 0 : index
    %c0_4 = arith.constant 0 : index
    %8 = vector.load %arg2[%c0_3, %c0_4] : memref<256x128xbf16, #tpu.memory_space<vmem>>, vector<256x128xbf16>
    %cst = arith.constant dense<0.000000e+00> : vector<8x128xf32>
    %9 = tpu.matmul %7, %8, %cst {dimension_numbers = #tpu.dot_dimension_numbers<[1], [0], [0], [1], [0, 0, 1, 1], [], []>} : vector<8x256xbf16>, vector<256x128xbf16>, vector<8x128xf32> -> vector<8x128xf32>
    %10 = vector.broadcast %1 : vector<1x128xf32> to vector<8x128xf32>
    %11 = arith.addf %9, %10 : vector<8x128xf32>
    %cst_5 = arith.constant 5.000000e-01 : f32
    %12 = vector.broadcast %cst_5 : f32 to vector<8x128xf32>
    %13 = arith.mulf %12, %11 : vector<8x128xf32>
    %cst_6 = arith.constant 4.471500e-02 : f32
    %14 = vector.broadcast %cst_6 : f32 to vector<8x128xf32>
    %15 = arith.mulf %14, %11 : vector<8x128xf32>
    %16 = arith.mulf %15, %11 : vector<8x128xf32>
    %17 = arith.mulf %16, %11 : vector<8x128xf32>
    %18 = arith.addf %11, %17 : vector<8x128xf32>
    %cst_7 = arith.constant 0.797884583 : f32
    %19 = vector.broadcast %cst_7 : f32 to vector<8x128xf32>
    %20 = arith.mulf %19, %18 : vector<8x128xf32>
    %21 = math.tanh %20 : vector<8x128xf32>
    %cst_8 = arith.constant 1.000000e+00 : f32
    %22 = vector.broadcast %cst_8 : f32 to vector<8x128xf32>
    %23 = arith.addf %22, %21 : vector<8x128xf32>
    %24 = arith.mulf %13, %23 : vector<8x128xf32>
    %cst_9 = arith.constant dense<0.000000e+00> : vector<8xf32>
    %25 = vector.multi_reduction <add>, %24, %cst_9 [1] : vector<8x128xf32> to vector<8xf32>
    %26 = vector.shape_cast %25 : vector<8xf32> to vector<8x1xf32>
    %cst_10 = arith.constant 1.280000e+02 : f32
    %27 = vector.broadcast %cst_10 : f32 to vector<8x1xf32>
    %28 = arith.divf %26, %27 : vector<8x1xf32>
    %29 = vector.broadcast %28 : vector<8x1xf32> to vector<8x128xf32>
    %30 = arith.subf %24, %29 : vector<8x128xf32>
    %31 = arith.mulf %30, %30 : vector<8x128xf32>
    %cst_11 = arith.constant dense<0.000000e+00> : vector<8xf32>
    %32 = vector.multi_reduction <add>, %31, %cst_11 [1] : vector<8x128xf32> to vector<8xf32>
    %33 = vector.shape_cast %32 : vector<8xf32> to vector<8x1xf32>
    %cst_12 = arith.constant 1.280000e+02 : f32
    %34 = vector.broadcast %cst_12 : f32 to vector<8x1xf32>
    %35 = arith.divf %33, %34 : vector<8x1xf32>
    %cst_13 = arith.constant 9.99999996E-13 : f32
    %36 = vector.broadcast %cst_13 : f32 to vector<8x1xf32>
    %37 = arith.addf %35, %36 : vector<8x1xf32>
    %38 = math.rsqrt %37 : vector<8x1xf32>
    %39 = vector.broadcast %38 : vector<8x1xf32> to vector<8x128xf32>
    %40 = arith.mulf %30, %39 : vector<8x128xf32>
    %41 = vector.broadcast %2 : vector<1x128xf32> to vector<8x128xf32>
    %42 = arith.mulf %40, %41 : vector<8x128xf32>
    %43 = vector.broadcast %3 : vector<1x128xf32> to vector<8x128xf32>
    %44 = arith.addf %42, %43 : vector<8x128xf32>
    %45 = arith.truncf %44 : vector<8x128xf32> to vector<8x128xbf16>
    %c0_14 = arith.constant 0 : index
    %c0_15 = arith.constant 0 : index
    %46 = vector.load %arg3[%c0_14, %c0_15] : memref<128x128xbf16, #tpu.memory_space<vmem>>, vector<128x128xbf16>
    %cst_16 = arith.constant dense<0.000000e+00> : vector<8x128xf32>
    %47 = tpu.matmul %45, %46, %cst_16 {dimension_numbers = #tpu.dot_dimension_numbers<[1], [0], [0], [1], [0, 0, 1, 1], [], []>} : vector<8x128xbf16>, vector<128x128xbf16>, vector<8x128xf32> -> vector<8x128xf32>
    %48 = vector.broadcast %4 : vector<1x128xf32> to vector<8x128xf32>
    %49 = arith.addf %47, %48 : vector<8x128xf32>
    %cst_17 = arith.constant 5.000000e-01 : f32
    %50 = vector.broadcast %cst_17 : f32 to vector<8x128xf32>
    %51 = arith.mulf %50, %49 : vector<8x128xf32>
    %cst_18 = arith.constant 4.471500e-02 : f32
    %52 = vector.broadcast %cst_18 : f32 to vector<8x128xf32>
    %53 = arith.mulf %52, %49 : vector<8x128xf32>
    %54 = arith.mulf %53, %49 : vector<8x128xf32>
    %55 = arith.mulf %54, %49 : vector<8x128xf32>
    %56 = arith.addf %49, %55 : vector<8x128xf32>
    %cst_19 = arith.constant 0.797884583 : f32
    %57 = vector.broadcast %cst_19 : f32 to vector<8x128xf32>
    %58 = arith.mulf %57, %56 : vector<8x128xf32>
    %59 = math.tanh %58 : vector<8x128xf32>
    %cst_20 = arith.constant 1.000000e+00 : f32
    %60 = vector.broadcast %cst_20 : f32 to vector<8x128xf32>
    %61 = arith.addf %60, %59 : vector<8x128xf32>
    %62 = arith.mulf %51, %61 : vector<8x128xf32>
    %cst_21 = arith.constant dense<0.000000e+00> : vector<8xf32>
    %63 = vector.multi_reduction <add>, %62, %cst_21 [1] : vector<8x128xf32> to vector<8xf32>
    %64 = vector.shape_cast %63 : vector<8xf32> to vector<8x1xf32>
    %cst_22 = arith.constant 1.280000e+02 : f32
    %65 = vector.broadcast %cst_22 : f32 to vector<8x1xf32>
    %66 = arith.divf %64, %65 : vector<8x1xf32>
    %67 = vector.broadcast %66 : vector<8x1xf32> to vector<8x128xf32>
    %68 = arith.subf %62, %67 : vector<8x128xf32>
    %69 = arith.mulf %68, %68 : vector<8x128xf32>
    %cst_23 = arith.constant dense<0.000000e+00> : vector<8xf32>
    %70 = vector.multi_reduction <add>, %69, %cst_23 [1] : vector<8x128xf32> to vector<8xf32>
    %71 = vector.shape_cast %70 : vector<8xf32> to vector<8x1xf32>
    %cst_24 = arith.constant 1.280000e+02 : f32
    %72 = vector.broadcast %cst_24 : f32 to vector<8x1xf32>
    %73 = arith.divf %71, %72 : vector<8x1xf32>
    %cst_25 = arith.constant 9.99999996E-13 : f32
    %74 = vector.broadcast %cst_25 : f32 to vector<8x1xf32>
    %75 = arith.addf %73, %74 : vector<8x1xf32>
    %76 = math.rsqrt %75 : vector<8x1xf32>
    %77 = vector.broadcast %76 : vector<8x1xf32> to vector<8x128xf32>
    %78 = arith.mulf %68, %77 : vector<8x128xf32>
    %79 = vector.broadcast %5 : vector<1x128xf32> to vector<8x128xf32>
    %80 = arith.mulf %78, %79 : vector<8x128xf32>
    %81 = vector.broadcast %6 : vector<1x128xf32> to vector<8x128xf32>
    %82 = arith.addf %80, %81 : vector<8x128xf32>
    %83 = arith.truncf %82 : vector<8x128xf32> to vector<8x128xbf16>
    %c0_26 = arith.constant 0 : index
    %c0_27 = arith.constant 0 : index
    %84 = vector.load %arg5[%c0_26, %c0_27] : memref<8x128xbf16, #tpu.memory_space<vmem>>, vector<8x128xbf16>
    tpu.vector_store %arg5[%c0_26, %c0_27], %83 {strides = array<i32>} : memref<8x128xbf16, #tpu.memory_space<vmem>>, vector<8x128xbf16>,
    return
  }
  func.func @transform_0(%arg0: i32) -> (i32, i32) {
    %c0_i32 = arith.constant 0 : i32
    %c0_i32_0 = arith.constant 0 : i32
    return %arg0, %c0_i32 : i32, i32
  }
  func.func @transform_1(%arg0: i32) -> (i32, i32) {
    %c0_i32 = arith.constant 0 : i32
    %c0_i32_0 = arith.constant 0 : i32
    %c0_i32_1 = arith.constant 0 : i32
    return %c0_i32, %c0_i32_0 : i32, i32
  }
  func.func @transform_2(%arg0: i32) -> (i32, i32) {
    %c0_i32 = arith.constant 0 : i32
    %c0_i32_0 = arith.constant 0 : i32
    %c0_i32_1 = arith.constant 0 : i32
    return %c0_i32, %c0_i32_0 : i32, i32
  }
  func.func @transform_3(%arg0: i32) -> (i32, i32) {
    %c0_i32 = arith.constant 0 : i32
    %c0_i32_0 = arith.constant 0 : i32
    %c0_i32_1 = arith.constant 0 : i32
    return %c0_i32, %c0_i32_0 : i32, i32
  }
  func.func @transform_4(%arg0: i32) -> (i32, i32) {
    %c0_i32 = arith.constant 0 : i32
    %c0_i32_0 = arith.constant 0 : i32
    return %arg0, %c0_i32 : i32, i32
  }
}

module attributes {stable_mosaic.version = 11 : i64} {
  func.func @_mlp_ln_kernel(%arg0: i32, %arg1: memref<8x256xbf16, #tpu.memory_space<vmem>>, %arg2: memref<256x128xbf16, #tpu.memory_space<vmem>>, %arg3: memref<128x128xbf16, #tpu.memory_space<vmem>>, %arg4: memref<8x128xf32, #tpu.memory_space<vmem>>, %arg5: memref<8x128xbf16, #tpu.memory_space<vmem>>) attributes {dimension_semantics = [#tpu.dimension_semantics<parallel>], iteration_bounds = array<i64: 2>, scalar_prefetch = 0 : i64, scratch_operands = 0 : i64, tpu.core_type = #tpu.core_type<tc>, window_params = [{transform_indices = @transform_0, window_bounds = array<i64: 8, 256>}, {pipeline_mode = #tpu.pipeline_mode<synchronous>, transform_indices = @transform_1, window_bounds = array<i64: 256, 128>}, {pipeline_mode = #tpu.pipeline_mode<synchronous>, transform_indices = @transform_2, window_bounds = array<i64: 128, 128>}, {pipeline_mode = #tpu.pipeline_mode<synchronous>, transform_indices = @transform_3, window_bounds = array<i64: 8, 128>}, {transform_indices = @transform_4, window_bounds = array<i64: 8, 128>}]} {
    %c0 = arith.constant 0 : index
    %c0_0 = arith.constant 0 : index
    %0 = vector.load %arg4[%c0, %c0_0] : memref<8x128xf32, #tpu.memory_space<vmem>>, vector<8x128xf32>
    %1 = vector.extract_strided_slice %0 {offsets = [0, 0], sizes = [1, 128], strides = [1, 1]} : vector<8x128xf32> to vector<1x128xf32>
    %2 = vector.extract_strided_slice %0 {offsets = [1, 0], sizes = [1, 128], strides = [1, 1]} : vector<8x128xf32> to vector<1x128xf32>
    %3 = vector.extract_strided_slice %0 {offsets = [2, 0], sizes = [1, 128], strides = [1, 1]} : vector<8x128xf32> to vector<1x128xf32>
    %4 = vector.extract_strided_slice %0 {offsets = [3, 0], sizes = [1, 128], strides = [1, 1]} : vector<8x128xf32> to vector<1x128xf32>
    %5 = vector.extract_strided_slice %0 {offsets = [4, 0], sizes = [1, 128], strides = [1, 1]} : vector<8x128xf32> to vector<1x128xf32>
    %6 = vector.extract_strided_slice %0 {offsets = [5, 0], sizes = [1, 128], strides = [1, 1]} : vector<8x128xf32> to vector<1x128xf32>
    %c0_1 = arith.constant 0 : index
    %c0_2 = arith.constant 0 : index
    %7 = vector.load %arg1[%c0_1, %c0_2] : memref<8x256xbf16, #tpu.memory_space<vmem>>, vector<8x256xbf16>
    %c0_3 = arith.constant 0 : index
    %c0_4 = arith.constant 0 : index
    %8 = vector.load %arg2[%c0_3, %c0_4] : memref<256x128xbf16, #tpu.memory_space<vmem>>, vector<256x128xbf16>
    %cst = arith.constant dense<0.000000e+00> : vector<8x128xf32>
    %9 = tpu.matmul %7, %8, %cst {dimension_numbers = #tpu.dot_dimension_numbers<[1], [0], [0], [1], [0, 0, 1, 1], [], []>} : vector<8x256xbf16>, vector<256x128xbf16>, vector<8x128xf32> -> vector<8x128xf32>
    %10 = vector.broadcast %1 : vector<1x128xf32> to vector<8x128xf32>
    %11 = arith.addf %9, %10 : vector<8x128xf32>
    %cst_5 = arith.constant 5.000000e-01 : f32
    %12 = vector.broadcast %cst_5 : f32 to vector<8x128xf32>
    %13 = arith.mulf %12, %11 : vector<8x128xf32>
    %cst_6 = arith.constant 4.471500e-02 : f32
    %14 = vector.broadcast %cst_6 : f32 to vector<8x128xf32>
    %15 = arith.mulf %14, %11 : vector<8x128xf32>
    %16 = arith.mulf %15, %11 : vector<8x128xf32>
    %17 = arith.mulf %16, %11 : vector<8x128xf32>
    %18 = arith.addf %11, %17 : vector<8x128xf32>
    %cst_7 = arith.constant 0.797884583 : f32
    %19 = vector.broadcast %cst_7 : f32 to vector<8x128xf32>
    %20 = arith.mulf %19, %18 : vector<8x128xf32>
    %21 = math.tanh %20 : vector<8x128xf32>
    %cst_8 = arith.constant 1.000000e+00 : f32
    %22 = vector.broadcast %cst_8 : f32 to vector<8x128xf32>
    %23 = arith.addf %22, %21 : vector<8x128xf32>
    %24 = arith.mulf %13, %23 : vector<8x128xf32>
    %cst_9 = arith.constant dense<0.000000e+00> : vector<8xf32>
    %25 = vector.multi_reduction <add>, %24, %cst_9 [1] : vector<8x128xf32> to vector<8xf32>
    %26 = vector.shape_cast %25 : vector<8xf32> to vector<8x1xf32>
    %cst_10 = arith.constant 1.280000e+02 : f32
    %27 = vector.broadcast %cst_10 : f32 to vector<8x1xf32>
    %28 = arith.divf %26, %27 : vector<8x1xf32>
    %29 = vector.broadcast %28 : vector<8x1xf32> to vector<8x128xf32>
    %30 = arith.subf %24, %29 : vector<8x128xf32>
    %31 = arith.mulf %30, %30 : vector<8x128xf32>
    %cst_11 = arith.constant dense<0.000000e+00> : vector<8xf32>
    %32 = vector.multi_reduction <add>, %31, %cst_11 [1] : vector<8x128xf32> to vector<8xf32>
    %33 = vector.shape_cast %32 : vector<8xf32> to vector<8x1xf32>
    %cst_12 = arith.constant 1.280000e+02 : f32
    %34 = vector.broadcast %cst_12 : f32 to vector<8x1xf32>
    %35 = arith.divf %33, %34 : vector<8x1xf32>
    %cst_13 = arith.constant 9.99999996E-13 : f32
    %36 = vector.broadcast %cst_13 : f32 to vector<8x1xf32>
    %37 = arith.addf %35, %36 : vector<8x1xf32>
    %38 = math.rsqrt %37 : vector<8x1xf32>
    %39 = vector.broadcast %38 : vector<8x1xf32> to vector<8x128xf32>
    %40 = arith.mulf %30, %39 : vector<8x128xf32>
    %41 = vector.broadcast %2 : vector<1x128xf32> to vector<8x128xf32>
    %42 = arith.mulf %40, %41 : vector<8x128xf32>
    %43 = vector.broadcast %3 : vector<1x128xf32> to vector<8x128xf32>
    %44 = arith.addf %42, %43 : vector<8x128xf32>
    %45 = arith.truncf %44 : vector<8x128xf32> to vector<8x128xbf16>
    %c0_14 = arith.constant 0 : index
    %c0_15 = arith.constant 0 : index
    %46 = vector.load %arg3[%c0_14, %c0_15] : memref<128x128xbf16, #tpu.memory_space<vmem>>, vector<128x128xbf16>
    %cst_16 = arith.constant dense<0.000000e+00> : vector<8x128xf32>
    %47 = tpu.matmul %45, %46, %cst_16 {dimension_numbers = #tpu.dot_dimension_numbers<[1], [0], [0], [1], [0, 0, 1, 1], [], []>} : vector<8x128xbf16>, vector<128x128xbf16>, vector<8x128xf32> -> vector<8x128xf32>
    %48 = vector.broadcast %4 : vector<1x128xf32> to vector<8x128xf32>
    %49 = arith.addf %47, %48 : vector<8x128xf32>
    %cst_17 = arith.constant 5.000000e-01 : f32
    %50 = vector.broadcast %cst_17 : f32 to vector<8x128xf32>
    %51 = arith.mulf %50, %49 : vector<8x128xf32>
    %cst_18 = arith.constant 4.471500e-02 : f32
    %52 = vector.broadcast %cst_18 : f32 to vector<8x128xf32>
    %53 = arith.mulf %52, %49 : vector<8x128xf32>
    %54 = arith.mulf %53, %49 : vector<8x128xf32>
    %55 = arith.mulf %54, %49 : vector<8x128xf32>
    %56 = arith.addf %49, %55 : vector<8x128xf32>
    %cst_19 = arith.constant 0.797884583 : f32
    %57 = vector.broadcast %cst_19 : f32 to vector<8x128xf32>
    %58 = arith.mulf %57, %56 : vector<8x128xf32>
    %59 = math.tanh %58 : vector<8x128xf32>
    %cst_20 = arith.constant 1.000000e+00 : f32
    %60 = vector.broadcast %cst_20 : f32 to vector<8x128xf32>
    %61 = arith.addf %60, %59 : vector<8x128xf32>
    %62 = arith.mulf %51, %61 : vector<8x128xf32>
    %cst_21 = arith.constant dense<0.000000e+00> : vector<8xf32>
    %63 = vector.multi_reduction <add>, %62, %cst_21 [1] : vector<8x128xf32> to vector<8xf32>
    %64 = vector.shape_cast %63 : vector<8xf32> to vector<8x1xf32>
    %cst_22 = arith.constant 1.280000e+02 : f32
    %65 = vector.broadcast %cst_22 : f32 to vector<8x1xf32>
    %66 = arith.divf %64, %65 : vector<8x1xf32>
    %67 = vector.broadcast %66 : vector<8x1xf32> to vector<8x128xf32>
    %68 = arith.subf %62, %67 : vector<8x128xf32>
    %69 = arith.mulf %68, %68 : vector<8x128xf32>
    %cst_23 = arith.constant dense<0.000000e+00> : vector<8xf32>
    %70 = vector.multi_reduction <add>, %69, %cst_23 [1] : vector<8x128xf32> to vector<8xf32>
    %71 = vector.shape_cast %70 : vector<8xf32> to vector<8x1xf32>
    %cst_24 = arith.constant 1.280000e+02 : f32
    %72 = vector.broadcast %cst_24 : f32 to vector<8x1xf32>
    %73 = arith.divf %71, %72 : vector<8x1xf32>
    %cst_25 = arith.constant 9.99999996E-13 : f32
    %74 = vector.broadcast %cst_25 : f32 to vector<8x1xf32>
    %75 = arith.addf %73, %74 : vector<8x1xf32>
    %76 = math.rsqrt %75 : vector<8x1xf32>
    %77 = vector.broadcast %76 : vector<8x1xf32> to vector<8x128xf32>
    %78 = arith.mulf %68, %77 : vector<8x128xf32>
    %79 = vector.broadcast %5 : vector<1x128xf32> to vector<8x128xf32>
    %80 = arith.mulf %78, %79 : vector<8x128xf32>
    %81 = vector.broadcast %6 : vector<1x128xf32> to vector<8x128xf32>
    %82 = arith.addf %80, %81 : vector<8x128xf32>
    %83 = arith.truncf %82 : vector<8x128xf32> to vector<8x128xbf16>
    %c0_26 = arith.constant 0 : index
    %c0_27 = arith.constant 0 : index
    %84 = vector.load %arg5[%c0_26, %c0_27] : memref<8x128xbf16, #tpu.memory_space<vmem>>, vector<8x128xbf16>
    tpu.vector_store %arg5[%c0_26, %c0_27], %83 {strides = array<i32>} : memref<8x128xbf16, #tpu.memory_space<vmem>>, vector<8x128xbf16>,
    return
  }
  func.func @transform_0(%arg0: i32) -> (i32, i32) {
    %c0_i32 = arith.constant 0 : i32
    %c0_i32_0 = arith.constant 0 : i32
    return %arg0, %c0_i32 : i32, i32
  }
  func.func @transform_1(%arg0: i32) -> (i32, i32) {
    %c0_i32 = arith.constant 0 : i32
    %c0_i32_0 = arith.constant 0 : i32
    %c0_i32_1 = arith.constant 0 : i32
    return %c0_i32, %c0_i32_0 : i32, i32
  }
  func.func @transform_2(%arg0: i32) -> (i32, i32) {
    %c0_i32 = arith.constant 0 : i32
    %c0_i32_0 = arith.constant 0 : i32
    %c0_i32_1 = arith.constant 0 : i32
    return %c0_i32, %c0_i32_0 : i32, i32
  }
  func.func @transform_3(%arg0: i32) -> (i32, i32) {
    %c0_i32 = arith.constant 0 : i32
    %c0_i32_0 = arith.constant 0 : i32
    %c0_i32_1 = arith.constant 0 : i32
    return %c0_i32, %c0_i32_0 : i32, i32
  }
  func.func @transform_4(%arg0: i32) -> (i32, i32) {
    %c0_i32 = arith.constant 0 : i32
    %c0_i32_0 = arith.constant 0 : i32
    return %arg0, %c0_i32 : i32, i32
  }
}

</mosaic_0001>

<llo_original>
// kernel: tpu_custom_call.1
$region0: #{tpu_custom_call.1}
  #allocation0 [shape = 'u32[]', space=smem, size = 0x4, offset = 0x4, fixed_abs, tag = 'smem constant byte address 0x4 - core index']
  #allocation1 [shape = 'u32[144,128]{1,0:T(1,128)}', space=vmem, size = 0x12000, scoped, tag = 'internal scratch']
  %s0 = inlined_call_operand.hbm [shape: bf16[16,256], index: 0, kind: input, shape index: {}]
  %s1 = inlined_call_operand.hbm [shape: bf16[256,128], index: 1, kind: input, shape index: {}]
  %s2 = inlined_call_operand.hbm [shape: bf16[128,128], index: 2, kind: input, shape index: {}]
  %s3 = inlined_call_operand.vmem [shape: f32[8,128], index: 3, kind: input, shape index: {}]
  %s4 = inlined_call_operand.hbm [shape: bf16[16,128], index: 4, kind: output, shape index: {}]
  %s5 = sld [smem:[#allocation0]]
  $region61: #{tpu_custom_call.1} parent=0
    _
  %s7 = ssub.s32 1, %s5
  %s8 = scalar_select 0, %s7, %s5
  $region1: #{tpu_custom_call.1} parent=0
    #allocation2 [shape = 'u8[8192]{0}', space=vmem, size = 0x2000, scoped, tag = 'input window, operand 0']
    #allocation3 [shape = 's32[2]{0}', space=sflag, size = 0x8, scoped, tag = 'scoped memory for tpu_custom_call.1']
    #allocation4 [shape = 's32[2]{0}', space=sflag, size = 0x8, scoped, tag = 'scoped memory for tpu_custom_call.1']
    #allocation5 [shape = 'u8[65536]{0}', space=vmem, size = 0x10000, scoped, tag = 'input window, operand 1, single buffered']
    #allocation6 [shape = 's32[1]{0}', space=sflag, size = 0x4, scoped, tag = 'scoped memory for tpu_custom_call.1']
    #allocation7 [shape = 'u8[32768]{0}', space=vmem, size = 0x8000, scoped, tag = 'input window, operand 2, single buffered']
    #allocation8 [shape = 'u8[4096]{0}', space=vmem, size = 0x1000, scoped, tag = 'output window, operand 0']
    %9 = vsyncpa [#allocation3], 0
    %s10 = scalar_lea.sflag [#allocation3], 1
    %11 = vsyncpa %s10, 0
    %12 = vsyncpa [#allocation6], 0
    %13 = vsyncpa [#allocation4], 0
    %s14 = scalar_lea.sflag [#allocation4], 1
    %15 = vsyncpa %s14, 0
    loop: start=0, step=1, limit=4
    $region2: #{tpu_custom_call.1} parent=1 // loop_pre_header
      _
    $region3: #{tpu_custom_call.1} parent=1 // loop_header
      %s17 = sphi 0, %s21
      %p18 = scmp.ge.s32.totalorder %s17, 4
      %s27 = sphi 0, %s29
      %s30 = sphi 0, %s27
      %s31 = sphi 0, %s30
      %s47 = sphi 0, %s31
      %s51 = sphi 0, %s51
      %s53 = sphi 0, %s51
      %s54 = sphi 0, %s53
      %s68 = sphi 0, %s54
      %s72 = sphi 0, %s72
      %s74 = sphi 0, %s72
      %s75 = sphi 0, %s74
      %s89 = sphi 0, %s75
      %s93 = sphi 0, %s93
      %s95 = sphi 0, %s93
      %s96 = sphi 0, %s95
      %s110 = sphi 0, %s96
      %s116 = sphi 0, %s118
      %s119 = sphi 0, %s116
      %s120 = sphi 0, %s119
      %s136 = sphi 0, %s120
    $region4: #{tpu_custom_call.1} parent=1 // loop_header_branch
      %20 = sbr.rel (%p18) target = $region8
    $region5: #{tpu_custom_call.1} parent=1 // loop_body
      %s22 = ssub.s32 %s17, 1
      %s23 = ssub.s32 %s17, 2
      %s24 = sadd.s32 %s17, 1
      %s25 = ssub.s32 %s17, %s24
      %p26 = scmp.eq.s32.totalorder %s25, 0
      %s28 = sadd.s32 %s27, 1
      %s29 = scalar_select %p26, %s27, %s28
      %p32 = pneg %p26
      %p33 = scmp.eq.s32.totalorder %s17, 1
      %p34 = por %p32, %p33
      %p35 = scmp.ne.s32.totalorder %s27, %s30
      %p36 = scmp.eq.s32.totalorder %s17, 0
      %p37 = por %p35, %p36
      %p38 = scmp.ne.s32.totalorder %s27, %s30
      %p39 = scmp.eq.s32.totalorder %s22, 1
      %p40 = por %p38, %p39
      %p41 = scmp.ne.s32.totalorder %s30, %s31
      %p42 = scmp.eq.s32.totalorder %s22, 0
      %p43 = por %p41, %p42
      %p44 = scmp.ne.s32.totalorder %s30, %s31
      %p45 = scmp.eq.s32.totalorder %s23, 1
      %p46 = por %p44, %p45
      %p48 = scmp.ne.s32.totalorder %s31, %s47
      %p49 = scmp.eq.s32.totalorder %s23, 0
      %p50 = por %p48, %p49
      %s52 = sadd.s32 %s51, 1
      %p55 = scmp.eq.s32.totalorder %s17, 1
      %p56 = scmp.ne.s32.totalorder %s51, %s53
      %p57 = scmp.eq.s32.totalorder %s17, 0
      %p58 = por %p56, %p57
      %p59 = scmp.ne.s32.totalorder %s51, %s53
      %p60 = scmp.eq.s32.totalorder %s22, 1
      %p61 = por %p59, %p60
      %p62 = scmp.ne.s32.totalorder %s53, %s54
      %p63 = scmp.eq.s32.totalorder %s22, 0
      %p64 = por %p62, %p63
      %p65 = scmp.ne.s32.totalorder %s53, %s54
      %p66 = scmp.eq.s32.totalorder %s23, 1
      %p67 = por %p65, %p66
      %p69 = scmp.ne.s32.totalorder %s54, %s68
      %p70 = scmp.eq.s32.totalorder %s23, 0
      %p71 = por %p69, %p70
      %s73 = sadd.s32 %s72, 1
      %p76 = scmp.eq.s32.totalorder %s17, 1
      %p77 = scmp.ne.s32.totalorder %s72, %s74
      %p78 = scmp.eq.s32.totalorder %s17, 0
      %p79 = por %p77, %p78
      %p80 = scmp.ne.s32.totalorder %s72, %s74
      %p81 = scmp.eq.s32.totalorder %s22, 1
      %p82 = por %p80, %p81
      %p83 = scmp.ne.s32.totalorder %s74, %s75
      %p84 = scmp.eq.s32.totalorder %s22, 0
      %p85 = por %p83, %p84
      %p86 = scmp.ne.s32.totalorder %s74, %s75
      %p87 = scmp.eq.s32.totalorder %s23, 1
      %p88 = por %p86, %p87
      %p90 = scmp.ne.s32.totalorder %s75, %s89
      %p91 = scmp.eq.s32.totalorder %s23, 0
      %p92 = por %p90, %p91
      %s94 = sadd.s32 %s93, 1
      %p97 = scmp.eq.s32.totalorder %s17, 1
      %p98 = scmp.ne.s32.totalorder %s93, %s95
      %p99 = scmp.eq.s32.totalorder %s17, 0
      %p100 = por %p98, %p99
      %p101 = scmp.ne.s32.totalorder %s93, %s95
      %p102 = scmp.eq.s32.totalorder %s22, 1
      %p103 = por %p101, %p102
      %p104 = scmp.ne.s32.totalorder %s95, %s96
      %p105 = scmp.eq.s32.totalorder %s22, 0
      %p106 = por %p104, %p105
      %p107 = scmp.ne.s32.totalorder %s95, %s96
      %p108 = scmp.eq.s32.totalorder %s23, 1
      %p109 = por %p107, %p108
      %p111 = scmp.ne.s32.totalorder %s96, %s110
      %p112 = scmp.eq.s32.totalorder %s23, 0
      %p113 = por %p111, %p112
      %s114 = ssub.s32 %s17, %s24
      %p115 = scmp.eq.s32.totalorder %s114, 0
      %s117 = sadd.s32 %s116, 1
      %s118 = scalar_select %p115, %s116, %s117
      %p121 = pneg %p115
      %p122 = scmp.eq.s32.totalorder %s17, 1
      %p123 = por %p121, %p122
      %p124 = scmp.ne.s32.totalorder %s116, %s119
      %p125 = scmp.eq.s32.totalorder %s17, 0
      %p126 = por %p124, %p125
      %p127 = scmp.ne.s32.totalorder %s116, %s119
      %p128 = scmp.eq.s32.totalorder %s22, 1
      %p129 = por %p127, %p128
      %p130 = scmp.ne.s32.totalorder %s119, %s120
      %p131 = scmp.eq.s32.totalorder %s22, 0
      %p132 = por %p130, %p131
      %p133 = scmp.ne.s32.totalorder %s119, %s120
      %p134 = scmp.eq.s32.totalorder %s23, 1
      %p135 = por %p133, %p134
      %p137 = scmp.ne.s32.totalorder %s120, %s136
      %p138 = scmp.eq.s32.totalorder %s23, 0
      %p139 = por %p137, %p138
      %p140 = scmp.le.s32.totalorder 1, %s17
      %p141 = scmp.lt.s32.totalorder %s17, 3
      %p142 = pnand %p140, %p141
      %p143 = pneg %p142
      // Predicated region
      $region9: #{tpu_custom_call.1} parent=5 // pred_check
        _
      $region10: #{tpu_custom_call.1} parent=5 // pred_check_branch
        %145 = sbr.rel (%p142) target = $region12
      $region11: #{tpu_custom_call.1} parent=5 // pred_region
        %s146 = ssub.s32 %s17, 1
        // Predicated region
        $region13: #{tpu_custom_call.1} parent=11 // pred_check
          %p147 = pneg %p64
        $region14: #{tpu_custom_call.1} parent=11 // pred_check_branch
          %149 = sbr.rel (%p147) target = $region16
        $region15: #{tpu_custom_call.1} parent=11 // pred_region
          %s151 = ssub.s32 2048, 2048
          %152 = vsyncadd [#allocation6], %s151
          %s153 = sshll.u32 [#allocation5], 4
          %s154 = int_to_ptr.vmem [resolvable:$true] %s153
          %159 = dma.hbm_to_vmem [thread:$0]  %s1, 2048, %s154, [#allocation6], 64, 64, 4
        $region16: #{tpu_custom_call.1} parent=11 // pred_fallthru
          _
        // Predicated region
        $region17: #{tpu_custom_call.1} parent=11 // pred_check
          %p160 = pneg %p85
        $region18: #{tpu_custom_call.1} parent=11 // pred_check_branch
          %162 = sbr.rel (%p160) target = $region20
        $region19: #{tpu_custom_call.1} parent=11 // pred_region
          %s164 = ssub.s32 1024, 1024
          %165 = vsyncadd [#allocation6], %s164
          %s166 = sshll.u32 [#allocation7], 4
          %s167 = int_to_ptr.vmem [resolvable:$true] %s166
          %172 = dma.hbm_to_vmem [thread:$0]  %s2, 1024, %s167, [#allocation6], 64, 64, 4
        $region20: #{tpu_custom_call.1} parent=11 // pred_fallthru
          _
        // Predicated region
        $region21: #{tpu_custom_call.1} parent=11 // pred_check
          %p173 = pneg %p106
        $region22: #{tpu_custom_call.1} parent=11 // pred_check_branch
          %175 = sbr.rel (%p173) target = $region24
        $region23: #{tpu_custom_call.1} parent=11 // pred_region
          _
        $region24: #{tpu_custom_call.1} parent=11 // pred_fallthru
          _
      $region12: #{tpu_custom_call.1} parent=5 // pred_fallthru
        _
      %p176 = scmp.lt.s32.totalorder %s17, 2
      // Predicated region
      $region25: #{tpu_custom_call.1} parent=5 // pred_check
        %p177 = pneg %p176
      $region26: #{tpu_custom_call.1} parent=5 // pred_check_branch
        %179 = sbr.rel (%p177) target = $region28
      $region27: #{tpu_custom_call.1} parent=5 // pred_region
        // Predicated region
        $region29: #{tpu_custom_call.1} parent=27 // pred_check
          %p180 = pneg %p37
        $region30: #{tpu_custom_call.1} parent=27 // pred_check_branch
          %182 = sbr.rel (%p180) target = $region32
        $region31: #{tpu_custom_call.1} parent=27 // pred_region
          %s183 = sand.u32 %s27, 1
          %s184 = scalar_lea.sflag [#allocation3], %s183
          %s185 = sand.u32 %s27, 1
          %s186 = smul.addr %s185, 8
          %s187 = scalar_lea.vmem [#allocation2], %s186
          %s189 = ssub.s32 128, 128
          %190 = vsyncadd %s184, %s189
          %s191 = smul.addr %s17, 2
          %s192 = smul.addr %s191, 64
          %s193 = scalar_lea.hbm %s0, %s192
          %s195 = sshll.u32 %s187, 4
          %s196 = int_to_ptr.vmem [resolvable:$true] %s195
          %198 = dma.hbm_to_vmem [thread:$0]  %s193, 128, %s196, %s184
        $region32: #{tpu_custom_call.1} parent=27 // pred_fallthru
          _
      $region28: #{tpu_custom_call.1} parent=5 // pred_fallthru
        _
      %p199 = scmp.le.s32.totalorder 1, %s17
      %p200 = scmp.lt.s32.totalorder %s17, 3
      %p201 = pnand %p199, %p200
      %p202 = pneg %p201
      // Predicated region
      $region33: #{tpu_custom_call.1} parent=5 // pred_check
        _
      $region34: #{tpu_custom_call.1} parent=5 // pred_check_branch
        %204 = sbr.rel (%p201) target = $region36
      $region35: #{tpu_custom_call.1} parent=5 // pred_region
        %s205 = ssub.s32 %s17, 1
        %s206 = sand.u32 %s30, 1
        %s207 = scalar_lea.sflag [#allocation3], %s206
        %s208 = sand.u32 %s30, 1
        %s209 = smul.addr %s208, 8
        %s210 = scalar_lea.vmem [#allocation2], %s209
        // Predicated region
        $region37: #{tpu_custom_call.1} parent=35 // pred_check
          %p211 = pneg %p43
        $region38: #{tpu_custom_call.1} parent=35 // pred_check_branch
          %213 = sbr.rel (%p211) target = $region40
        $region39: #{tpu_custom_call.1} parent=35 // pred_region
          %214 = dma.done %s207, 128
        $region40: #{tpu_custom_call.1} parent=35 // pred_fallthru
          _
        // Predicated region
        $region41: #{tpu_custom_call.1} parent=35 // pred_check
          %p215 = pneg %p64
        $region42: #{tpu_custom_call.1} parent=35 // pred_check_branch
          %217 = sbr.rel (%p215) target = $region44
        $region43: #{tpu_custom_call.1} parent=35 // pred_region
          %218 = dma.done [#allocation6], 2048
        $region44: #{tpu_custom_call.1} parent=35 // pred_fallthru
          _
        // Predicated region
        $region45: #{tpu_custom_call.1} parent=35 // pred_check
          %p219 = pneg %p85
        $region46: #{tpu_custom_call.1} parent=35 // pred_check_branch
          %221 = sbr.rel (%p219) target = $region48
        $region47: #{tpu_custom_call.1} parent=35 // pred_region
          %222 = dma.done [#allocation6], 1024
        $region48: #{tpu_custom_call.1} parent=35 // pred_fallthru
          _
        %s223 = sand.u32 %s30, 1
        %s224 = scalar_lea.sflag [#allocation3], %s223
        %s225 = sand.u32 %s30, 1
        %s226 = smul.addr %s225, 8
        %s227 = scalar_lea.vmem [#allocation2], %s226
        %p228 = pneg %p43
        %p229 = pneg %p40
        %p230 = pneg %p64
        %p231 = pneg %p61
        %p232 = pneg %p85
        %p233 = pneg %p82
        %p234 = pneg %p106
        %p235 = pneg %p103
        %p236 = pneg %p132
        %p237 = pneg %p129
        %s238 = sand.u32 %s119, 1
        %s239 = scalar_lea.sflag [#allocation4], %s238
        %s240 = sand.u32 %s119, 1
        %s241 = smul.addr %s240, 4
        %s242 = scalar_lea.vmem [#allocation8], %s241
        %v244 = vld [vmem:[%s3] sm:$0xff]
        %v245 = vld [vmem:[%s210] sm:$0xff]
        %v246 = vld [vmem:[#allocation5] sm:$0xf]
        %v247 = vld [vmem:[#allocation5 + $0x4] sm:$0xf]
        %v248 = vld [vmem:[#allocation5 + $0x8] sm:$0xf]
        %v249 = vld [vmem:[#allocation5 + $0xc] sm:$0xf]
        %v250 = vld [vmem:[#allocation5 + $0x10] sm:$0xf]
        %v251 = vld [vmem:[#allocation5 + $0x14] sm:$0xf]
        %v252 = vld [vmem:[#allocation5 + $0x18] sm:$0xf]
        %v253 = vld [vmem:[#allocation5 + $0x1c] sm:$0xf]
        %v254 = vld [vmem:[#allocation5 + $0x20] sm:$0xf]
        %v255 = vld [vmem:[#allocation5 + $0x24] sm:$0xf]
        %v256 = vld [vmem:[#allocation5 + $0x28] sm:$0xf]
        %v257 = vld [vmem:[#allocation5 + $0x2c] sm:$0xf]
        %v258 = vld [vmem:[#allocation5 + $0x30] sm:$0xf]
        %v259 = vld [vmem:[#allocation5 + $0x34] sm:$0xf]
        %v260 = vld [vmem:[#allocation5 + $0x38] sm:$0xf]
        %v261 = vld [vmem:[#allocation5 + $0x3c] sm:$0xf]
        %v262 = vld [vmem:[#allocation5 + $0x40] sm:$0xf]
        %v263 = vld [vmem:[#allocation5 + $0x44] sm:$0xf]
        %v264 = vld [vmem:[#allocation5 + $0x48] sm:$0xf]
        %v265 = vld [vmem:[#allocation5 + $0x4c] sm:$0xf]
        %v266 = vld [vmem:[#allocation5 + $0x50] sm:$0xf]
        %v267 = vld [vmem:[#allocation5 + $0x54] sm:$0xf]
        %v268 = vld [vmem:[#allocation5 + $0x58] sm:$0xf]
        %v269 = vld [vmem:[#allocation5 + $0x5c] sm:$0xf]
        %v270 = vld [vmem:[#allocation5 + $0x60] sm:$0xf]
        %v271 = vld [vmem:[#allocation5 + $0x64] sm:$0xf]
        %v272 = vld [vmem:[#allocation5 + $0x68] sm:$0xf]
        %v273 = vld [vmem:[#allocation5 + $0x6c] sm:$0xf]
        %v274 = vld [vmem:[#allocation5 + $0x70] sm:$0xf]
        %v275 = vld [vmem:[#allocation5 + $0x74] sm:$0xf]
        %v276 = vld [vmem:[#allocation5 + $0x78] sm:$0xf]
        %v277 = vld [vmem:[#allocation5 + $0x7c] sm:$0xf]
        %v278 = vlaneseq
        %v279 = vshrl.u32 %v278, 7
        %v280 = vsub.s32 0, %v279
        %v281 = vrot.slane %v244, %v280
        %v283 = vunpack.c.l.b16 %v245
        %v284 = vunpack.c.h.b16 %v245
        %v285 = vpack.c.b16 %v283, %v283
        %v286 = vpack.c.b16 %v284, %v284
        %v321 = vunpack.c.l.b16 %v246
        %v322 = vunpack.c.l.b16 %v247
        %v323 = vunpack.c.l.b16 %v248
        %v324 = vunpack.c.l.b16 %v249
        %v325 = vunpack.c.l.b16 %v250
        %v326 = vunpack.c.l.b16 %v251
        %v327 = vunpack.c.l.b16 %v252
        %v328 = vunpack.c.l.b16 %v253
        %v329 = vunpack.c.l.b16 %v254
        %v330 = vunpack.c.l.b16 %v255
        %v331 = vunpack.c.l.b16 %v256
        %v332 = vunpack.c.l.b16 %v257
        %v333 = vunpack.c.l.b16 %v258
        %v334 = vunpack.c.l.b16 %v259
        %v335 = vunpack.c.l.b16 %v260
        %v336 = vunpack.c.l.b16 %v261
        %v337 = vunpack.c.l.b16 %v262
        %v338 = vunpack.c.l.b16 %v263
        %v339 = vunpack.c.l.b16 %v264
        %v340 = vunpack.c.l.b16 %v265
        %v341 = vunpack.c.l.b16 %v266
        %v342 = vunpack.c.l.b16 %v267
        %v343 = vunpack.c.l.b16 %v268
        %v344 = vunpack.c.l.b16 %v269
        %v345 = vunpack.c.l.b16 %v270
        %v346 = vunpack.c.l.b16 %v271
        %v347 = vunpack.c.l.b16 %v272
        %v348 = vunpack.c.l.b16 %v273
        %v349 = vunpack.c.l.b16 %v274
        %v350 = vunpack.c.l.b16 %v275
        %v351 = vunpack.c.l.b16 %v276
        %v352 = vunpack.c.l.b16 %v277
        %v353 = vpack.c.b16 %v322, %v321
        %v354 = vpack.c.b16 %v324, %v323
        %v355 = vpack.c.b16 %v326, %v325
        %v356 = vpack.c.b16 %v328, %v327
        %v357 = vpack.c.b16 %v330, %v329
        %v358 = vpack.c.b16 %v332, %v331
        %v359 = vpack.c.b16 %v334, %v333
        %v360 = vpack.c.b16 %v336, %v335
        %v361 = vpack.c.b16 %v338, %v337
        %v362 = vpack.c.b16 %v340, %v339
        %v363 = vpack.c.b16 %v342, %v341
        %v364 = vpack.c.b16 %v344, %v343
        %v365 = vpack.c.b16 %v346, %v345
        %v366 = vpack.c.b16 %v348, %v347
        %v367 = vpack.c.b16 %v350, %v349
        %v368 = vpack.c.b16 %v352, %v351
        %385 = vmatprep.subr.bf16.mxu0 0
        %386 = vmatpush1.bf16.msra.mxu0 %v353
        %387 = vmatprep.subr.bf16.mxu0 0
        %388 = vmatpush1.bf16.msra.mxu0 %v354
        %389 = vmatprep.subr.bf16.mxu0 0
        %390 = vmatpush1.bf16.msra.mxu0 %v355
        %391 = vmatprep.subr.bf16.mxu0 0
        %392 = vmatpush1.bf16.msra.mxu0 %v356
        %393 = vmatprep.subr.bf16.mxu0 0
        %394 = vmatpush1.bf16.msra.mxu0 %v357
        %395 = vmatprep.subr.bf16.mxu0 0
        %396 = vmatpush1.bf16.msra.mxu0 %v358
        %397 = vmatprep.subr.bf16.mxu0 0
        %398 = vmatpush1.bf16.msra.mxu0 %v359
        %399 = vmatprep.subr.bf16.mxu0 0
        %400 = vmatpush1.bf16.msra.mxu0 %v360
        %401 = vmatprep.subr.bf16.mxu0 0
        %402 = vmatpush1.bf16.msra.mxu0 %v361
        %403 = vmatprep.subr.bf16.mxu0 0
        %404 = vmatpush1.bf16.msra.mxu0 %v362
        %405 = vmatprep.subr.bf16.mxu0 0
        %406 = vmatpush1.bf16.msra.mxu0 %v363
        %407 = vmatprep.subr.bf16.mxu0 0
        %408 = vmatpush1.bf16.msra.mxu0 %v364
        %409 = vmatprep.subr.bf16.mxu0 0
        %410 = vmatpush1.bf16.msra.mxu0 %v365
        %411 = vmatprep.subr.bf16.mxu0 0
        %412 = vmatpush1.bf16.msra.mxu0 %v366
        %413 = vmatprep.subr.bf16.mxu0 0
        %414 = vmatpush1.bf16.msra.mxu0 %v367
        %415 = vmatprep.subr.bf16.mxu0 0
        %416 = vmatpush1.bf16.msra.mxu0 %v368
        %417 = vmatprep.mubr.bf16.mxu0 %v286
        %418 = vmatmul.mubr.bf16.gmra.mrb[0].mxu0 %v285
        %v419 = vpop.f32.mrb[0].mxu0
        %v420 = vadd.f32 %v281, %v419
        %v421 = vpop.f32.mrb[0].mxu0
        %v422 = vpop.f32.mrb[0].mxu0
        %v423 = vpop.f32.mrb[0].mxu0
        %424 = vdwg.mxu0
        %v425 = vmul.f32 %v420, 0.5
        %v426 = vmul.f32 %v420, 0.044715
        %v427 = vmul.f32 %v426, %v420
        %v428 = vmul.f32 %v427, %v420
        %v429 = vadd.f32 %v420, %v428
        %v430 = vmul.f32 %v429, 0.7978846
        %v431 = vtanh.pop %v430
        %v432 = vadd.f32 %v431, 1.0
        %v433 = vmul.f32 %v425, %v432
        %434 = vadd.xlane.f32.xlu0 %v433
        %v435 = vpop.xlane.xlu0 %434
        %v436 = vrcp.pop 128.0
        %v437 = vmul.f32 %v435, %v436
        %v438 = vsub.f32 %v433, %v437
        %v439 = vmul.f32 %v438, %v438
        %440 = vadd.xlane.f32.xlu0 %v439
        %v441 = vpop.xlane.xlu0 %440
        %v442 = vmul.f32 %v441, %v436
        %v443 = vadd.f32 %v442, 1e-12
        %v444 = vrsqrt.pop %v443
        %v445 = vmul.f32 %v438, %v444
        %v446 = vlaneseq
        %v447 = vshrl.u32 %v446, 7
        %v448 = vsub.s32 1, %v447
        %v449 = vrot.slane %v244, %v448
        %v450 = vmul.f32 %v445, %v449
        %v451 = vlaneseq
        %v452 = vshrl.u32 %v451, 7
        %v453 = vsub.s32 2, %v452
        %v454 = vrot.slane %v244, %v453
        %v455 = vadd.f32 %v450, %v454
        %v456 = vpack.c.bf16 %v455, %v455
        %v457 = vld [vmem:[#allocation7] sm:$0xf]
        %v458 = vld [vmem:[#allocation7 + $0x4] sm:$0xf]
        %v459 = vld [vmem:[#allocation7 + $0x8] sm:$0xf]
        %v460 = vld [vmem:[#allocation7 + $0xc] sm:$0xf]
        %v461 = vld [vmem:[#allocation7 + $0x10] sm:$0xf]
        %v462 = vld [vmem:[#allocation7 + $0x14] sm:$0xf]
        %v463 = vld [vmem:[#allocation7 + $0x18] sm:$0xf]
        %v464 = vld [vmem:[#allocation7 + $0x1c] sm:$0xf]
        %v465 = vld [vmem:[#allocation7 + $0x20] sm:$0xf]
        %v466 = vld [vmem:[#allocation7 + $0x24] sm:$0xf]
        %v467 = vld [vmem:[#allocation7 + $0x28] sm:$0xf]
        %v468 = vld [vmem:[#allocation7 + $0x2c] sm:$0xf]
        %v469 = vld [vmem:[#allocation7 + $0x30] sm:$0xf]
        %v470 = vld [vmem:[#allocation7 + $0x34] sm:$0xf]
        %v471 = vld [vmem:[#allocation7 + $0x38] sm:$0xf]
        %v472 = vld [vmem:[#allocation7 + $0x3c] sm:$0xf]
        %v473 = vlaneseq
        %v474 = vshrl.u32 %v473, 7
        %v475 = vsub.s32 3, %v474
        %v476 = vrot.slane %v244, %v475
        %v493 = vunpack.c.l.b16 %v457
        %v494 = vunpack.c.l.b16 %v458
        %v495 = vunpack.c.l.b16 %v459
        %v496 = vunpack.c.l.b16 %v460
        %v497 = vunpack.c.l.b16 %v461
        %v498 = vunpack.c.l.b16 %v462
        %v499 = vunpack.c.l.b16 %v463
        %v500 = vunpack.c.l.b16 %v464
        %v501 = vunpack.c.l.b16 %v465
        %v502 = vunpack.c.l.b16 %v466
        %v503 = vunpack.c.l.b16 %v467
        %v504 = vunpack.c.l.b16 %v468
        %v505 = vunpack.c.l.b16 %v469
        %v506 = vunpack.c.l.b16 %v470
        %v507 = vunpack.c.l.b16 %v471
        %v508 = vunpack.c.l.b16 %v472
        %v509 = vpack.c.b16 %v494, %v493
        %v510 = vpack.c.b16 %v496, %v495
        %v511 = vpack.c.b16 %v498, %v497
        %v512 = vpack.c.b16 %v500, %v499
        %v513 = vpack.c.b16 %v502, %v501
        %v514 = vpack.c.b16 %v504, %v503
        %v515 = vpack.c.b16 %v506, %v505
        %v516 = vpack.c.b16 %v508, %v507
        %525 = vmatprep.subr.bf16.mxu0 0
        %526 = vmatpush1.bf16.msra.mxu0 %v509
        %527 = vmatprep.subr.bf16.mxu0 0
        %528 = vmatpush1.bf16.msra.mxu0 %v510
        %529 = vmatprep.subr.bf16.mxu0 0
        %530 = vmatpush1.bf16.msra.mxu0 %v511
        %531 = vmatprep.subr.bf16.mxu0 0
        %532 = vmatpush1.bf16.msra.mxu0 %v512
        %533 = vmatprep.subr.bf16.mxu0 0
        %534 = vmatpush1.bf16.msra.mxu0 %v513
        %535 = vmatprep.subr.bf16.mxu0 0
        %536 = vmatpush1.bf16.msra.mxu0 %v514
        %537 = vmatprep.subr.bf16.mxu0 0
        %538 = vmatpush1.bf16.msra.mxu0 %v515
        %539 = vmatprep.subr.bf16.mxu0 0
        %540 = vmatpush1.bf16.msra.mxu0 %v516
        %541 = vmatprep.subr.bf16.mxu0 0
        %542 = vmatpush1.bf16.msra.mxu0 0
        %543 = vmatprep.subr.bf16.mxu0 0
        %544 = vmatpush1.bf16.msra.mxu0 0
        %545 = vmatprep.subr.bf16.mxu0 0
        %546 = vmatpush1.bf16.msra.mxu0 0
        %547 = vmatprep.subr.bf16.mxu0 0
        %548 = vmatpush1.bf16.msra.mxu0 0
        %549 = vmatprep.subr.bf16.mxu0 0
        %550 = vmatpush1.bf16.msra.mxu0 0
        %551 = vmatprep.subr.bf16.mxu0 0
        %552 = vmatpush1.bf16.msra.mxu0 0
        %553 = vmatprep.subr.bf16.mxu0 0
        %554 = vmatpush1.bf16.msra.mxu0 0
        %555 = vmatprep.subr.bf16.mxu0 0
        %556 = vmatpush1.bf16.msra.mxu0 0
        %557 = vmatprep.mubr.bf16.mxu0 0
        %558 = vmatmul.mubr.bf16.gmra.mrb[0].mxu0 %v456
        %v559 = vpop.f32.mrb[0].mxu0
        %v560 = vadd.f32 %v476, %v559
        %v561 = vpop.f32.mrb[0].mxu0
        %v562 = vpop.f32.mrb[0].mxu0
        %v563 = vpop.f32.mrb[0].mxu0
        %564 = vdwg.mxu0
        %v565 = vmul.f32 %v560, 0.5
        %v566 = vmul.f32 %v560, 0.044715
        %v567 = vmul.f32 %v566, %v560
        %v568 = vmul.f32 %v567, %v560
        %v569 = vadd.f32 %v560, %v568
        %v570 = vmul.f32 %v569, 0.7978846
        %v571 = vtanh.pop %v570
        %v572 = vadd.f32 %v571, 1.0
        %v573 = vmul.f32 %v565, %v572
        %574 = vadd.xlane.f32.xlu0 %v573
        %v575 = vpop.xlane.xlu0 %574
        %v576 = vmul.f32 %v575, %v436
        %v577 = vsub.f32 %v573, %v576
        %v578 = vmul.f32 %v577, %v577
        %579 = vadd.xlane.f32.xlu0 %v578
        %v580 = vpop.xlane.xlu0 %579
        %v581 = vmul.f32 %v580, %v436
        %v582 = vadd.f32 %v581, 1e-12
        %v583 = vrsqrt.pop %v582
        %v584 = vmul.f32 %v577, %v583
        %v585 = vlaneseq
        %v586 = vshrl.u32 %v585, 7
        %v587 = vsub.s32 4, %v586
        %v588 = vrot.slane %v244, %v587
        %v589 = vmul.f32 %v584, %v588
        %v590 = vlaneseq
        %v591 = vshrl.u32 %v590, 7
        %v592 = vsub.s32 5, %v591
        %v593 = vrot.slane %v244, %v592
        %v594 = vadd.f32 %v589, %v593
        %v595 = vpack.c.bf16 %v594, %v594
        %596 = vst [vmem:[%s242] sm:$0xf] %v595
        %s597 = sand.u32 %s119, 1
        %s598 = scalar_lea.sflag [#allocation4], %s597
        %s599 = sand.u32 %s119, 1
        %s600 = smul.addr %s599, 4
        %s601 = scalar_lea.vmem [#allocation8], %s600
        // Predicated region
        $region49: #{tpu_custom_call.1} parent=35 // pred_check
          %p602 = pneg %p129
        $region50: #{tpu_custom_call.1} parent=35 // pred_check_branch
          %604 = sbr.rel (%p602) target = $region52
        $region51: #{tpu_custom_call.1} parent=35 // pred_region
          %s606 = ssub.s32 64, 64
          %607 = vsyncadd %s598, %s606
          %s608 = smul.addr %s22, 64
          %s609 = scalar_lea.hbm %s4, %s608
          %s611 = sshll.u32 %s601, 4
          %s612 = int_to_ptr.vmem [resolvable:$true] %s611
          %614 = dma.vmem_to_hbm [thread:$0]  %s612, 64, %s609, %s598
        $region52: #{tpu_custom_call.1} parent=35 // pred_fallthru
          _
      $region36: #{tpu_custom_call.1} parent=5 // pred_fallthru
        _
      %p615 = scmp.le.s32.totalorder 2, %s17
      // Predicated region
      $region53: #{tpu_custom_call.1} parent=5 // pred_check
        %p616 = pneg %p615
      $region54: #{tpu_custom_call.1} parent=5 // pred_check_branch
        %618 = sbr.rel (%p616) target = $region56
      $region55: #{tpu_custom_call.1} parent=5 // pred_region
        %s619 = ssub.s32 %s17, 2
        // Predicated region
        $region57: #{tpu_custom_call.1} parent=55 // pred_check
          %p620 = pneg %p135
        $region58: #{tpu_custom_call.1} parent=55 // pred_check_branch
          %622 = sbr.rel (%p620) target = $region60
        $region59: #{tpu_custom_call.1} parent=55 // pred_region
          %s623 = sand.u32 %s120, 1
          %s624 = scalar_lea.sflag [#allocation4], %s623
          %s625 = sand.u32 %s120, 1
          %s626 = smul.addr %s625, 4
          %s627 = scalar_lea.vmem [#allocation8], %s626
          %628 = dma.done %s624, 64
        $region60: #{tpu_custom_call.1} parent=55 // pred_fallthru
          _
      $region56: #{tpu_custom_call.1} parent=5 // pred_fallthru
        _
    $region6: #{tpu_custom_call.1} parent=1 // loop_footer
      %s21 = sadd.s32 1, %s17
    $region7: #{tpu_custom_call.1} parent=1 // loop_footer_branch
      %16 = sbr.rel target = $region3
    $region8: #{tpu_custom_call.1} parent=1 // loop_exit
      _
    %629 = vsyncpa [#allocation3], 1
    %s630 = scalar_lea.sflag [#allocation3], 1
    %631 = vsyncpa %s630, 1
    %632 = vsyncpa [#allocation6], 1
    %633 = vsyncpa [#allocation4], 1
    %s634 = scalar_lea.sflag [#allocation4], 1
    %635 = vsyncpa %s634, 1

// kernel: tpu_custom_call.1
$region0: #{tpu_custom_call.1}
  #allocation0 [shape = 'u32[]', space=smem, size = 0x4, offset = 0x4, fixed_abs, tag = 'smem constant byte address 0x4 - core index']
  #allocation1 [shape = 'u32[144,128]{1,0:T(1,128)}', space=vmem, size = 0x12000, scoped, tag = 'internal scratch']
  %s0 = inlined_call_operand.hbm [shape: bf16[16,256], index: 0, kind: input, shape index: {}]
  %s1 = inlined_call_operand.hbm [shape: bf16[256,128], index: 1, kind: input, shape index: {}]
  %s2 = inlined_call_operand.hbm [shape: bf16[128,128], index: 2, kind: input, shape index: {}]
  %s3 = inlined_call_operand.vmem [shape: f32[8,128], index: 3, kind: input, shape index: {}]
  %s4 = inlined_call_operand.hbm [shape: bf16[16,128], index: 4, kind: output, shape index: {}]
  %s5 = sld [smem:[#allocation0]]
  $region61: #{tpu_custom_call.1} parent=0
    _
  %s7 = ssub.s32 1, %s5
  %s8 = scalar_select 0, %s7, %s5
  $region1: #{tpu_custom_call.1} parent=0
    #allocation2 [shape = 'u8[8192]{0}', space=vmem, size = 0x2000, scoped, tag = 'input window, operand 0']
    #allocation3 [shape = 's32[2]{0}', space=sflag, size = 0x8, scoped, tag = 'scoped memory for tpu_custom_call.1']
    #allocation4 [shape = 's32[2]{0}', space=sflag, size = 0x8, scoped, tag = 'scoped memory for tpu_custom_call.1']
    #allocation5 [shape = 'u8[65536]{0}', space=vmem, size = 0x10000, scoped, tag = 'input window, operand 1, single buffered']
    #allocation6 [shape = 's32[1]{0}', space=sflag, size = 0x4, scoped, tag = 'scoped memory for tpu_custom_call.1']
    #allocation7 [shape = 'u8[32768]{0}', space=vmem, size = 0x8000, scoped, tag = 'input window, operand 2, single buffered']
    #allocation8 [shape = 'u8[4096]{0}', space=vmem, size = 0x1000, scoped, tag = 'output window, operand 0']
    %9 = vsyncpa [#allocation3], 0
    %s10 = scalar_lea.sflag [#allocation3], 1
    %11 = vsyncpa %s10, 0
    %12 = vsyncpa [#allocation6], 0
    %13 = vsyncpa [#allocation4], 0
    %s14 = scalar_lea.sflag [#allocation4], 1
    %15 = vsyncpa %s14, 0
    loop: start=0, step=1, limit=4
    $region2: #{tpu_custom_call.1} parent=1 // loop_pre_header
      _
    $region3: #{tpu_custom_call.1} parent=1 // loop_header
      %s17 = sphi 0, %s21
      %p18 = scmp.ge.s32.totalorder %s17, 4
      %s27 = sphi 0, %s29
      %s30 = sphi 0, %s27
      %s31 = sphi 0, %s30
      %s47 = sphi 0, %s31
      %s51 = sphi 0, %s51
      %s53 = sphi 0, %s51
      %s54 = sphi 0, %s53
      %s68 = sphi 0, %s54
      %s72 = sphi 0, %s72
      %s74 = sphi 0, %s72
      %s75 = sphi 0, %s74
      %s89 = sphi 0, %s75
      %s93 = sphi 0, %s93
      %s95 = sphi 0, %s93
      %s96 = sphi 0, %s95
      %s110 = sphi 0, %s96
      %s116 = sphi 0, %s118
      %s119 = sphi 0, %s116
      %s120 = sphi 0, %s119
      %s136 = sphi 0, %s120
    $region4: #{tpu_custom_call.1} parent=1 // loop_header_branch
      %20 = sbr.rel (%p18) target = $region8
    $region5: #{tpu_custom_call.1} parent=1 // loop_body
      %s22 = ssub.s32 %s17, 1
      %s23 = ssub.s32 %s17, 2
      %s24 = sadd.s32 %s17, 1
      %s25 = ssub.s32 %s17, %s24
      %p26 = scmp.eq.s32.totalorder %s25, 0
      %s28 = sadd.s32 %s27, 1
      %s29 = scalar_select %p26, %s27, %s28
      %p32 = pneg %p26
      %p33 = scmp.eq.s32.totalorder %s17, 1
      %p34 = por %p32, %p33
      %p35 = scmp.ne.s32.totalorder %s27, %s30
      %p36 = scmp.eq.s32.totalorder %s17, 0
      %p37 = por %p35, %p36
      %p38 = scmp.ne.s32.totalorder %s27, %s30
      %p39 = scmp.eq.s32.totalorder %s22, 1
      %p40 = por %p38, %p39
      %p41 = scmp.ne.s32.totalorder %s30, %s31
      %p42 = scmp.eq.s32.totalorder %s22, 0
      %p43 = por %p41, %p42
      %p44 = scmp.ne.s32.totalorder %s30, %s31
      %p45 = scmp.eq.s32.totalorder %s23, 1
      %p46 = por %p44, %p45
      %p48 = scmp.ne.s32.totalorder %s31, %s47
      %p49 = scmp.eq.s32.totalorder %s23, 0
      %p50 = por %p48, %p49
      %s52 = sadd.s32 %s51, 1
      %p55 = scmp.eq.s32.totalorder %s17, 1
      %p56 = scmp.ne.s32.totalorder %s51, %s53
      %p57 = scmp.eq.s32.totalorder %s17, 0
      %p58 = por %p56, %p57
      %p59 = scmp.ne.s32.totalorder %s51, %s53
      %p60 = scmp.eq.s32.totalorder %s22, 1
      %p61 = por %p59, %p60
      %p62 = scmp.ne.s32.totalorder %s53, %s54
      %p63 = scmp.eq.s32.totalorder %s22, 0
      %p64 = por %p62, %p63
      %p65 = scmp.ne.s32.totalorder %s53, %s54
      %p66 = scmp.eq.s32.totalorder %s23, 1
      %p67 = por %p65, %p66
      %p69 = scmp.ne.s32.totalorder %s54, %s68
      %p70 = scmp.eq.s32.totalorder %s23, 0
      %p71 = por %p69, %p70
      %s73 = sadd.s32 %s72, 1
      %p76 = scmp.eq.s32.totalorder %s17, 1
      %p77 = scmp.ne.s32.totalorder %s72, %s74
      %p78 = scmp.eq.s32.totalorder %s17, 0
      %p79 = por %p77, %p78
      %p80 = scmp.ne.s32.totalorder %s72, %s74
      %p81 = scmp.eq.s32.totalorder %s22, 1
      %p82 = por %p80, %p81
      %p83 = scmp.ne.s32.totalorder %s74, %s75
      %p84 = scmp.eq.s32.totalorder %s22, 0
      %p85 = por %p83, %p84
      %p86 = scmp.ne.s32.totalorder %s74, %s75
      %p87 = scmp.eq.s32.totalorder %s23, 1
      %p88 = por %p86, %p87
      %p90 = scmp.ne.s32.totalorder %s75, %s89
      %p91 = scmp.eq.s32.totalorder %s23, 0
      %p92 = por %p90, %p91
      %s94 = sadd.s32 %s93, 1
      %p97 = scmp.eq.s32.totalorder %s17, 1
      %p98 = scmp.ne.s32.totalorder %s93, %s95
      %p99 = scmp.eq.s32.totalorder %s17, 0
      %p100 = por %p98, %p99
      %p101 = scmp.ne.s32.totalorder %s93, %s95
      %p102 = scmp.eq.s32.totalorder %s22, 1
      %p103 = por %p101, %p102
      %p104 = scmp.ne.s32.totalorder %s95, %s96
      %p105 = scmp.eq.s32.totalorder %s22, 0
      %p106 = por %p104, %p105
      %p107 = scmp.ne.s32.totalorder %s95, %s96
      %p108 = scmp.eq.s32.totalorder %s23, 1
      %p109 = por %p107, %p108
      %p111 = scmp.ne.s32.totalorder %s96, %s110
      %p112 = scmp.eq.s32.totalorder %s23, 0
      %p113 = por %p111, %p112
      %s114 = ssub.s32 %s17, %s24
      %p115 = scmp.eq.s32.totalorder %s114, 0
      %s117 = sadd.s32 %s116, 1
      %s118 = scalar_select %p115, %s116, %s117
      %p121 = pneg %p115
      %p122 = scmp.eq.s32.totalorder %s17, 1
      %p123 = por %p121, %p122
      %p124 = scmp.ne.s32.totalorder %s116, %s119
      %p125 = scmp.eq.s32.totalorder %s17, 0
      %p126 = por %p124, %p125
      %p127 = scmp.ne.s32.totalorder %s116, %s119
      %p128 = scmp.eq.s32.totalorder %s22, 1
      %p129 = por %p127, %p128
      %p130 = scmp.ne.s32.totalorder %s119, %s120
      %p131 = scmp.eq.s32.totalorder %s22, 0
      %p132 = por %p130, %p131
      %p133 = scmp.ne.s32.totalorder %s119, %s120
      %p134 = scmp.eq.s32.totalorder %s23, 1
      %p135 = por %p133, %p134
      %p137 = scmp.ne.s32.totalorder %s120, %s136
      %p138 = scmp.eq.s32.totalorder %s23, 0
      %p139 = por %p137, %p138
      %p140 = scmp.le.s32.totalorder 1, %s17
      %p141 = scmp.lt.s32.totalorder %s17, 3
      %p142 = pnand %p140, %p141
      %p143 = pneg %p142
      // Predicated region
      $region9: #{tpu_custom_call.1} parent=5 // pred_check
        _
      $region10: #{tpu_custom_call.1} parent=5 // pred_check_branch
        %145 = sbr.rel (%p142) target = $region12
      $region11: #{tpu_custom_call.1} parent=5 // pred_region
        %s146 = ssub.s32 %s17, 1
        // Predicated region
        $region13: #{tpu_custom_call.1} parent=11 // pred_check
          %p147 = pneg %p64
        $region14: #{tpu_custom_call.1} parent=11 // pred_check_branch
          %149 = sbr.rel (%p147) target = $region16
        $region15: #{tpu_custom_call.1} parent=11 // pred_region
          %s151 = ssub.s32 2048, 2048
          %152 = vsyncadd [#allocation6], %s151
          %s153 = sshll.u32 [#allocation5], 4
          %s154 = int_to_ptr.vmem [resolvable:$true] %s153
          %159 = dma.hbm_to_vmem [thread:$0]  %s1, 2048, %s154, [#allocation6], 64, 64, 4
        $region16: #{tpu_custom_call.1} parent=11 // pred_fallthru
          _
        // Predicated region
        $region17: #{tpu_custom_call.1} parent=11 // pred_check
          %p160 = pneg %p85
        $region18: #{tpu_custom_call.1} parent=11 // pred_check_branch
          %162 = sbr.rel (%p160) target = $region20
        $region19: #{tpu_custom_call.1} parent=11 // pred_region
          %s164 = ssub.s32 1024, 1024
          %165 = vsyncadd [#allocation6], %s164
          %s166 = sshll.u32 [#allocation7], 4
          %s167 = int_to_ptr.vmem [resolvable:$true] %s166
          %172 = dma.hbm_to_vmem [thread:$0]  %s2, 1024, %s167, [#allocation6], 64, 64, 4
        $region20: #{tpu_custom_call.1} parent=11 // pred_fallthru
          _
        // Predicated region
        $region21: #{tpu_custom_call.1} parent=11 // pred_check
          %p173 = pneg %p106
        $region22: #{tpu_custom_call.1} parent=11 // pred_check_branch
          %175 = sbr.rel (%p173) target = $region24
        $region23: #{tpu_custom_call.1} parent=11 // pred_region
          _
        $region24: #{tpu_custom_call.1} parent=11 // pred_fallthru
          _
      $region12: #{tpu_custom_call.1} parent=5 // pred_fallthru
        _
      %p176 = scmp.lt.s32.totalorder %s17, 2
      // Predicated region
      $region25: #{tpu_custom_call.1} parent=5 // pred_check
        %p177 = pneg %p176
      $region26: #{tpu_custom_call.1} parent=5 // pred_check_branch
        %179 = sbr.rel (%p177) target = $region28
      $region27: #{tpu_custom_call.1} parent=5 // pred_region
        // Predicated region
        $region29: #{tpu_custom_call.1} parent=27 // pred_check
          %p180 = pneg %p37
        $region30: #{tpu_custom_call.1} parent=27 // pred_check_branch
          %182 = sbr.rel (%p180) target = $region32
        $region31: #{tpu_custom_call.1} parent=27 // pred_region
          %s183 = sand.u32 %s27, 1
          %s184 = scalar_lea.sflag [#allocation3], %s183
          %s185 = sand.u32 %s27, 1
          %s186 = smul.addr %s185, 8
          %s187 = scalar_lea.vmem [#allocation2], %s186
          %s189 = ssub.s32 128, 128
          %190 = vsyncadd %s184, %s189
          %s191 = smul.addr %s17, 2
          %s192 = smul.addr %s191, 64
          %s193 = scalar_lea.hbm %s0, %s192
          %s195 = sshll.u32 %s187, 4
          %s196 = int_to_ptr.vmem [resolvable:$true] %s195
          %198 = dma.hbm_to_vmem [thread:$0]  %s193, 128, %s196, %s184
        $region32: #{tpu_custom_call.1} parent=27 // pred_fallthru
          _
      $region28: #{tpu_custom_call.1} parent=5 // pred_fallthru
        _
      %p199 = scmp.le.s32.totalorder 1, %s17
      %p200 = scmp.lt.s32.totalorder %s17, 3
      %p201 = pnand %p199, %p200
      %p202 = pneg %p201
      // Predicated region
      $region33: #{tpu_custom_call.1} parent=5 // pred_check
        _
      $region34: #{tpu_custom_call.1} parent=5 // pred_check_branch
        %204 = sbr.rel (%p201) target = $region36
      $region35: #{tpu_custom_call.1} parent=5 // pred_region
        %s205 = ssub.s32 %s17, 1
        %s206 = sand.u32 %s30, 1
        %s207 = scalar_lea.sflag [#allocation3], %s206
        %s208 = sand.u32 %s30, 1
        %s209 = smul.addr %s208, 8
        %s210 = scalar_lea.vmem [#allocation2], %s209
        // Predicated region
        $region37: #{tpu_custom_call.1} parent=35 // pred_check
          %p211 = pneg %p43
        $region38: #{tpu_custom_call.1} parent=35 // pred_check_branch
          %213 = sbr.rel (%p211) target = $region40
        $region39: #{tpu_custom_call.1} parent=35 // pred_region
          %214 = dma.done %s207, 128
        $region40: #{tpu_custom_call.1} parent=35 // pred_fallthru
          _
        // Predicated region
        $region41: #{tpu_custom_call.1} parent=35 // pred_check
          %p215 = pneg %p64
        $region42: #{tpu_custom_call.1} parent=35 // pred_check_branch
          %217 = sbr.rel (%p215) target = $region44
        $region43: #{tpu_custom_call.1} parent=35 // pred_region
          %218 = dma.done [#allocation6], 2048
        $region44: #{tpu_custom_call.1} parent=35 // pred_fallthru
          _
        // Predicated region
        $region45: #{tpu_custom_call.1} parent=35 // pred_check
          %p219 = pneg %p85
        $region46: #{tpu_custom_call.1} parent=35 // pred_check_branch
          %221 = sbr.rel (%p219) target = $region48
        $region47: #{tpu_custom_call.1} parent=35 // pred_region
          %222 = dma.done [#allocation6], 1024
        $region48: #{tpu_custom_call.1} parent=35 // pred_fallthru
          _
        %s223 = sand.u32 %s30, 1
        %s224 = scalar_lea.sflag [#allocation3], %s223
        %s225 = sand.u32 %s30, 1
        %s226 = smul.addr %s225, 8
        %s227 = scalar_lea.vmem [#allocation2], %s226
        %p228 = pneg %p43
        %p229 = pneg %p40
        %p230 = pneg %p64
        %p231 = pneg %p61
        %p232 = pneg %p85
        %p233 = pneg %p82
        %p234 = pneg %p106
        %p235 = pneg %p103
        %p236 = pneg %p132
        %p237 = pneg %p129
        %s238 = sand.u32 %s119, 1
        %s239 = scalar_lea.sflag [#allocation4], %s238
        %s240 = sand.u32 %s119, 1
        %s241 = smul.addr %s240, 4
        %s242 = scalar_lea.vmem [#allocation8], %s241
        %v244 = vld [vmem:[%s3] sm:$0xff]
        %v245 = vld [vmem:[%s210] sm:$0xff]
        %v246 = vld [vmem:[#allocation5] sm:$0xf]
        %v247 = vld [vmem:[#allocation5 + $0x4] sm:$0xf]
        %v248 = vld [vmem:[#allocation5 + $0x8] sm:$0xf]
        %v249 = vld [vmem:[#allocation5 + $0xc] sm:$0xf]
        %v250 = vld [vmem:[#allocation5 + $0x10] sm:$0xf]
        %v251 = vld [vmem:[#allocation5 + $0x14] sm:$0xf]
        %v252 = vld [vmem:[#allocation5 + $0x18] sm:$0xf]
        %v253 = vld [vmem:[#allocation5 + $0x1c] sm:$0xf]
        %v254 = vld [vmem:[#allocation5 + $0x20] sm:$0xf]
        %v255 = vld [vmem:[#allocation5 + $0x24] sm:$0xf]
        %v256 = vld [vmem:[#allocation5 + $0x28] sm:$0xf]
        %v257 = vld [vmem:[#allocation5 + $0x2c] sm:$0xf]
        %v258 = vld [vmem:[#allocation5 + $0x30] sm:$0xf]
        %v259 = vld [vmem:[#allocation5 + $0x34] sm:$0xf]
        %v260 = vld [vmem:[#allocation5 + $0x38] sm:$0xf]
        %v261 = vld [vmem:[#allocation5 + $0x3c] sm:$0xf]
        %v262 = vld [vmem:[#allocation5 + $0x40] sm:$0xf]
        %v263 = vld [vmem:[#allocation5 + $0x44] sm:$0xf]
        %v264 = vld [vmem:[#allocation5 + $0x48] sm:$0xf]
        %v265 = vld [vmem:[#allocation5 + $0x4c] sm:$0xf]
        %v266 = vld [vmem:[#allocation5 + $0x50] sm:$0xf]
        %v267 = vld [vmem:[#allocation5 + $0x54] sm:$0xf]
        %v268 = vld [vmem:[#allocation5 + $0x58] sm:$0xf]
        %v269 = vld [vmem:[#allocation5 + $0x5c] sm:$0xf]
        %v270 = vld [vmem:[#allocation5 + $0x60] sm:$0xf]
        %v271 = vld [vmem:[#allocation5 + $0x64] sm:$0xf]
        %v272 = vld [vmem:[#allocation5 + $0x68] sm:$0xf]
        %v273 = vld [vmem:[#allocation5 + $0x6c] sm:$0xf]
        %v274 = vld [vmem:[#allocation5 + $0x70] sm:$0xf]
        %v275 = vld [vmem:[#allocation5 + $0x74] sm:$0xf]
        %v276 = vld [vmem:[#allocation5 + $0x78] sm:$0xf]
        %v277 = vld [vmem:[#allocation5 + $0x7c] sm:$0xf]
        %v278 = vlaneseq
        %v279 = vshrl.u32 %v278, 7
        %v280 = vsub.s32 0, %v279
        %v281 = vrot.slane %v244, %v280
        %v283 = vunpack.c.l.b16 %v245
        %v284 = vunpack.c.h.b16 %v245
        %v285 = vpack.c.b16 %v283, %v283
        %v286 = vpack.c.b16 %v284, %v284
        %v321 = vunpack.c.l.b16 %v246
        %v322 = vunpack.c.l.b16 %v247
        %v323 = vunpack.c.l.b16 %v248
        %v324 = vunpack.c.l.b16 %v249
        %v325 = vunpack.c.l.b16 %v250
        %v326 = vunpack.c.l.b16 %v251
        %v327 = vunpack.c.l.b16 %v252
        %v328 = vunpack.c.l.b16 %v253
        %v329 = vunpack.c.l.b16 %v254
        %v330 = vunpack.c.l.b16 %v255
        %v331 = vunpack.c.l.b16 %v256
        %v332 = vunpack.c.l.b16 %v257
        %v333 = vunpack.c.l.b16 %v258
        %v334 = vunpack.c.l.b16 %v259
        %v335 = vunpack.c.l.b16 %v260
        %v336 = vunpack.c.l.b16 %v261
        %v337 = vunpack.c.l.b16 %v262
        %v338 = vunpack.c.l.b16 %v263
        %v339 = vunpack.c.l.b16 %v264
        %v340 = vunpack.c.l.b16 %v265
        %v341 = vunpack.c.l.b16 %v266
        %v342 = vunpack.c.l.b16 %v267
        %v343 = vunpack.c.l.b16 %v268
        %v344 = vunpack.c.l.b16 %v269
        %v345 = vunpack.c.l.b16 %v270
        %v346 = vunpack.c.l.b16 %v271
        %v347 = vunpack.c.l.b16 %v272
        %v348 = vunpack.c.l.b16 %v273
        %v349 = vunpack.c.l.b16 %v274
        %v350 = vunpack.c.l.b16 %v275
        %v351 = vunpack.c.l.b16 %v276
        %v352 = vunpack.c.l.b16 %v277
        %v353 = vpack.c.b16 %v322, %v321
        %v354 = vpack.c.b16 %v324, %v323
        %v355 = vpack.c.b16 %v326, %v325
        %v356 = vpack.c.b16 %v328, %v327
        %v357 = vpack.c.b16 %v330, %v329
        %v358 = vpack.c.b16 %v332, %v331
        %v359 = vpack.c.b16 %v334, %v333
        %v360 = vpack.c.b16 %v336, %v335
        %v361 = vpack.c.b16 %v338, %v337
        %v362 = vpack.c.b16 %v340, %v339
        %v363 = vpack.c.b16 %v342, %v341
        %v364 = vpack.c.b16 %v344, %v343
        %v365 = vpack.c.b16 %v346, %v345
        %v366 = vpack.c.b16 %v348, %v347
        %v367 = vpack.c.b16 %v350, %v349
        %v368 = vpack.c.b16 %v352, %v351
        %385 = vmatprep.subr.bf16.mxu0 0
        %386 = vmatpush1.bf16.msra.mxu0 %v353
        %387 = vmatprep.subr.bf16.mxu0 0
        %388 = vmatpush1.bf16.msra.mxu0 %v354
        %389 = vmatprep.subr.bf16.mxu0 0
        %390 = vmatpush1.bf16.msra.mxu0 %v355
        %391 = vmatprep.subr.bf16.mxu0 0
        %392 = vmatpush1.bf16.msra.mxu0 %v356
        %393 = vmatprep.subr.bf16.mxu0 0
        %394 = vmatpush1.bf16.msra.mxu0 %v357
        %395 = vmatprep.subr.bf16.mxu0 0
        %396 = vmatpush1.bf16.msra.mxu0 %v358
        %397 = vmatprep.subr.bf16.mxu0 0
        %398 = vmatpush1.bf16.msra.mxu0 %v359
        %399 = vmatprep.subr.bf16.mxu0 0
        %400 = vmatpush1.bf16.msra.mxu0 %v360
        %401 = vmatprep.subr.bf16.mxu0 0
        %402 = vmatpush1.bf16.msra.mxu0 %v361
        %403 = vmatprep.subr.bf16.mxu0 0
        %404 = vmatpush1.bf16.msra.mxu0 %v362
        %405 = vmatprep.subr.bf16.mxu0 0
        %406 = vmatpush1.bf16.msra.mxu0 %v363
        %407 = vmatprep.subr.bf16.mxu0 0
        %408 = vmatpush1.bf16.msra.mxu0 %v364
        %409 = vmatprep.subr.bf16.mxu0 0
        %410 = vmatpush1.bf16.msra.mxu0 %v365
        %411 = vmatprep.subr.bf16.mxu0 0
        %412 = vmatpush1.bf16.msra.mxu0 %v366
        %413 = vmatprep.subr.bf16.mxu0 0
        %414 = vmatpush1.bf16.msra.mxu0 %v367
        %415 = vmatprep.subr.bf16.mxu0 0
        %416 = vmatpush1.bf16.msra.mxu0 %v368
        %417 = vmatprep.mubr.bf16.mxu0 %v286
        %418 = vmatmul.mubr.bf16.gmra.mrb[0].mxu0 %v285
        %v419 = vpop.f32.mrb[0].mxu0
        %v420 = vadd.f32 %v281, %v419
        %v421 = vpop.f32.mrb[0].mxu0
        %v422 = vpop.f32.mrb[0].mxu0
        %v423 = vpop.f32.mrb[0].mxu0
        %424 = vdwg.mxu0
        %v425 = vmul.f32 %v420, 0.5
        %v426 = vmul.f32 %v420, 0.044715
        %v427 = vmul.f32 %v426, %v420
        %v428 = vmul.f32 %v427, %v420
        %v429 = vadd.f32 %v420, %v428
        %v430 = vmul.f32 %v429, 0.7978846
        %v431 = vtanh.pop %v430
        %v432 = vadd.f32 %v431, 1.0
        %v433 = vmul.f32 %v425, %v432
        %434 = vadd.xlane.f32.xlu0 %v433
        %v435 = vpop.xlane.xlu0 %434
        %v436 = vrcp.pop 128.0
        %v437 = vmul.f32 %v435, %v436
        %v438 = vsub.f32 %v433, %v437
        %v439 = vmul.f32 %v438, %v438
        %440 = vadd.xlane.f32.xlu0 %v439
        %v441 = vpop.xlane.xlu0 %440
        %v442 = vmul.f32 %v441, %v436
        %v443 = vadd.f32 %v442, 1e-12
        %v444 = vrsqrt.pop %v443
        %v445 = vmul.f32 %v438, %v444
        %v446 = vlaneseq
        %v447 = vshrl.u32 %v446, 7
        %v448 = vsub.s32 1, %v447
        %v449 = vrot.slane %v244, %v448
        %v450 = vmul.f32 %v445, %v449
        %v451 = vlaneseq
        %v452 = vshrl.u32 %v451, 7
        %v453 = vsub.s32 2, %v452
        %v454 = vrot.slane %v244, %v453
        %v455 = vadd.f32 %v450, %v454
        %v456 = vpack.c.bf16 %v455, %v455
        %v457 = vld [vmem:[#allocation7] sm:$0xf]
        %v458 = vld [vmem:[#allocation7 + $0x4] sm:$0xf]
        %v459 = vld [vmem:[#allocation7 + $0x8] sm:$0xf]
        %v460 = vld [vmem:[#allocation7 + $0xc] sm:$0xf]
        %v461 = vld [vmem:[#allocation7 + $0x10] sm:$0xf]
        %v462 = vld [vmem:[#allocation7 + $0x14] sm:$0xf]
        %v463 = vld [vmem:[#allocation7 + $0x18] sm:$0xf]
        %v464 = vld [vmem:[#allocation7 + $0x1c] sm:$0xf]
        %v465 = vld [vmem:[#allocation7 + $0x20] sm:$0xf]
        %v466 = vld [vmem:[#allocation7 + $0x24] sm:$0xf]
        %v467 = vld [vmem:[#allocation7 + $0x28] sm:$0xf]
        %v468 = vld [vmem:[#allocation7 + $0x2c] sm:$0xf]
        %v469 = vld [vmem:[#allocation7 + $0x30] sm:$0xf]
        %v470 = vld [vmem:[#allocation7 + $0x34] sm:$0xf]
        %v471 = vld [vmem:[#allocation7 + $0x38] sm:$0xf]
        %v472 = vld [vmem:[#allocation7 + $0x3c] sm:$0xf]
        %v473 = vlaneseq
        %v474 = vshrl.u32 %v473, 7
        %v475 = vsub.s32 3, %v474
        %v476 = vrot.slane %v244, %v475
        %v493 = vunpack.c.l.b16 %v457
        %v494 = vunpack.c.l.b16 %v458
        %v495 = vunpack.c.l.b16 %v459
        %v496 = vunpack.c.l.b16 %v460
        %v497 = vunpack.c.l.b16 %v461
        %v498 = vunpack.c.l.b16 %v462
        %v499 = vunpack.c.l.b16 %v463
        %v500 = vunpack.c.l.b16 %v464
        %v501 = vunpack.c.l.b16 %v465
        %v502 = vunpack.c.l.b16 %v466
        %v503 = vunpack.c.l.b16 %v467
        %v504 = vunpack.c.l.b16 %v468
        %v505 = vunpack.c.l.b16 %v469
        %v506 = vunpack.c.l.b16 %v470
        %v507 = vunpack.c.l.b16 %v471
        %v508 = vunpack.c.l.b16 %v472
        %v509 = vpack.c.b16 %v494, %v493
        %v510 = vpack.c.b16 %v496, %v495
        %v511 = vpack.c.b16 %v498, %v497
        %v512 = vpack.c.b16 %v500, %v499
        %v513 = vpack.c.b16 %v502, %v501
        %v514 = vpack.c.b16 %v504, %v503
        %v515 = vpack.c.b16 %v506, %v505
        %v516 = vpack.c.b16 %v508, %v507
        %525 = vmatprep.subr.bf16.mxu0 0
        %526 = vmatpush1.bf16.msra.mxu0 %v509
        %527 = vmatprep.subr.bf16.mxu0 0
        %528 = vmatpush1.bf16.msra.mxu0 %v510
        %529 = vmatprep.subr.bf16.mxu0 0
        %530 = vmatpush1.bf16.msra.mxu0 %v511
        %531 = vmatprep.subr.bf16.mxu0 0
        %532 = vmatpush1.bf16.msra.mxu0 %v512
        %533 = vmatprep.subr.bf16.mxu0 0
        %534 = vmatpush1.bf16.msra.mxu0 %v513
        %535 = vmatprep.subr.bf16.mxu0 0
        %536 = vmatpush1.bf16.msra.mxu0 %v514
        %537 = vmatprep.subr.bf16.mxu0 0
        %538 = vmatpush1.bf16.msra.mxu0 %v515
        %539 = vmatprep.subr.bf16.mxu0 0
        %540 = vmatpush1.bf16.msra.mxu0 %v516
        %541 = vmatprep.subr.bf16.mxu0 0
        %542 = vmatpush1.bf16.msra.mxu0 0
        %543 = vmatprep.subr.bf16.mxu0 0
        %544 = vmatpush1.bf16.msra.mxu0 0
        %545 = vmatprep.subr.bf16.mxu0 0
        %546 = vmatpush1.bf16.msra.mxu0 0
        %547 = vmatprep.subr.bf16.mxu0 0
        %548 = vmatpush1.bf16.msra.mxu0 0
        %549 = vmatprep.subr.bf16.mxu0 0
        %550 = vmatpush1.bf16.msra.mxu0 0
        %551 = vmatprep.subr.bf16.mxu0 0
        %552 = vmatpush1.bf16.msra.mxu0 0
        %553 = vmatprep.subr.bf16.mxu0 0
        %554 = vmatpush1.bf16.msra.mxu0 0
        %555 = vmatprep.subr.bf16.mxu0 0
        %556 = vmatpush1.bf16.msra.mxu0 0
        %557 = vmatprep.mubr.bf16.mxu0 0
        %558 = vmatmul.mubr.bf16.gmra.mrb[0].mxu0 %v456
        %v559 = vpop.f32.mrb[0].mxu0
        %v560 = vadd.f32 %v476, %v559
        %v561 = vpop.f32.mrb[0].mxu0
        %v562 = vpop.f32.mrb[0].mxu0
        %v563 = vpop.f32.mrb[0].mxu0
        %564 = vdwg.mxu0
        %v565 = vmul.f32 %v560, 0.5
        %v566 = vmul.f32 %v560, 0.044715
        %v567 = vmul.f32 %v566, %v560
        %v568 = vmul.f32 %v567, %v560
        %v569 = vadd.f32 %v560, %v568
        %v570 = vmul.f32 %v569, 0.7978846
        %v571 = vtanh.pop %v570
        %v572 = vadd.f32 %v571, 1.0
        %v573 = vmul.f32 %v565, %v572
        %574 = vadd.xlane.f32.xlu0 %v573
        %v575 = vpop.xlane.xlu0 %574
        %v576 = vmul.f32 %v575, %v436
        %v577 = vsub.f32 %v573, %v576
        %v578 = vmul.f32 %v577, %v577
        %579 = vadd.xlane.f32.xlu0 %v578
        %v580 = vpop.xlane.xlu0 %579
        %v581 = vmul.f32 %v580, %v436
        %v582 = vadd.f32 %v581, 1e-12
        %v583 = vrsqrt.pop %v582
        %v584 = vmul.f32 %v577, %v583
        %v585 = vlaneseq
        %v586 = vshrl.u32 %v585, 7
        %v587 = vsub.s32 4, %v586
        %v588 = vrot.slane %v244, %v587
        %v589 = vmul.f32 %v584, %v588
        %v590 = vlaneseq
        %v591 = vshrl.u32 %v590, 7
        %v592 = vsub.s32 5, %v591
        %v593 = vrot.slane %v244, %v592
        %v594 = vadd.f32 %v589, %v593
        %v595 = vpack.c.bf16 %v594, %v594
        %596 = vst [vmem:[%s242] sm:$0xf] %v595
        %s597 = sand.u32 %s119, 1
        %s598 = scalar_lea.sflag [#allocation4], %s597
        %s599 = sand.u32 %s119, 1
        %s600 = smul.addr %s599, 4
        %s601 = scalar_lea.vmem [#allocation8], %s600
        // Predicated region
        $region49: #{tpu_custom_call.1} parent=35 // pred_check
          %p602 = pneg %p129
        $region50: #{tpu_custom_call.1} parent=35 // pred_check_branch
          %604 = sbr.rel (%p602) target = $region52
        $region51: #{tpu_custom_call.1} parent=35 // pred_region
          %s606 = ssub.s32 64, 64
          %607 = vsyncadd %s598, %s606
          %s608 = smul.addr %s22, 64
          %s609 = scalar_lea.hbm %s4, %s608
          %s611 = sshll.u32 %s601, 4
          %s612 = int_to_ptr.vmem [resolvable:$true] %s611
          %614 = dma.vmem_to_hbm [thread:$0]  %s612, 64, %s609, %s598
        $region52: #{tpu_custom_call.1} parent=35 // pred_fallthru
          _
      $region36: #{tpu_custom_call.1} parent=5 // pred_fallthru
        _
      %p615 = scmp.le.s32.totalorder 2, %s17
      // Predicated region
      $region53: #{tpu_custom_call.1} parent=5 // pred_check
        %p616 = pneg %p615
      $region54: #{tpu_custom_call.1} parent=5 // pred_check_branch
        %618 = sbr.rel (%p616) target = $region56
      $region55: #{tpu_custom_call.1} parent=5 // pred_region
        %s619 = ssub.s32 %s17, 2
        // Predicated region
        $region57: #{tpu_custom_call.1} parent=55 // pred_check
          %p620 = pneg %p135
        $region58: #{tpu_custom_call.1} parent=55 // pred_check_branch
          %622 = sbr.rel (%p620) target = $region60
        $region59: #{tpu_custom_call.1} parent=55 // pred_region
          %s623 = sand.u32 %s120, 1
          %s624 = scalar_lea.sflag [#allocation4], %s623
          %s625 = sand.u32 %s120, 1
          %s626 = smul.addr %s625, 4
          %s627 = scalar_lea.vmem [#allocation8], %s626
          %628 = dma.done %s624, 64
        $region60: #{tpu_custom_call.1} parent=55 // pred_fallthru
          _
      $region56: #{tpu_custom_call.1} parent=5 // pred_fallthru
        _
    $region6: #{tpu_custom_call.1} parent=1 // loop_footer
      %s21 = sadd.s32 1, %s17
    $region7: #{tpu_custom_call.1} parent=1 // loop_footer_branch
      %16 = sbr.rel target = $region3
    $region8: #{tpu_custom_call.1} parent=1 // loop_exit
      _
    %629 = vsyncpa [#allocation3], 1
    %s630 = scalar_lea.sflag [#allocation3], 1
    %631 = vsyncpa %s630, 1
    %632 = vsyncpa [#allocation6], 1
    %633 = vsyncpa [#allocation4], 1
    %s634 = scalar_lea.sflag [#allocation4], 1
    %635 = vsyncpa %s634, 1

</llo_original>
